<compile_context>
chip_gen: v6e
topology: v6e:2x2x1
jax: 0.10.0
libtpu: 0.0.40
codegen_flags: <defaults>
</compile_context>

<pallas_src>
import functools

import jax
import jax.numpy as jnp
from jax import lax
from jax.experimental import pallas as pl
from jax.experimental.pallas import tpu as pltpu


def _round_up(n, m):
    return ((n + m - 1) // m) * m


def speech_lstm_kernel(x_ref, w_ih_ref, w_hh_ref, b_ref, w_fc_ref, b_fc_ref,
                       out_ref, h_ref, c_ref, *, seq_len):
    """One grid step = one chunk of t_chunk timesteps.

    x_ref:    (1, t_chunk*Bp, I)   bf16   (time-major, chunk-flattened)
    w_ih_ref: (I, 4*Hp)            bf16   gate-blocked [i,f,g,o], lane-aligned
    w_hh_ref: (Hp, 4*Hp)           bf16
    b_ref:    (1, 4*Hp)            f32    b_ih + b_hh, gate-blocked
    w_fc_ref: (Hp, Op)             f32
    b_fc_ref: (1, Op)              f32
    out_ref:  (Bp, Op)             f32    resident across grid, written once
    h_ref/c_ref: VMEM scratch (Bp, Hp) f32, persistent recurrent state
    """
    b_pad, h_pad = h_ref.shape
    t_chunk = x_ref.shape[1] // b_pad

    chunk = pl.program_id(0)
    n_chunks = pl.num_programs(0)

    @pl.when(chunk == 0)
    def _init():
        h_ref[...] = jnp.zeros_like(h_ref)
        c_ref[...] = jnp.zeros_like(c_ref)

    # Phase 1: hoisted input projection for the whole chunk -- one big MXU
    # matmul, off the serial recurrence critical path.
    xw = (jnp.dot(x_ref[0], w_ih_ref[...], preferred_element_type=jnp.float32)
          + b_ref[...])                                  # (t_chunk*Bp, 4Hp) f32

    w_hh = w_hh_ref[...]                                 # (Hp, 4Hp) bf16
    ragged = (seq_len % t_chunk) != 0

    # Phase 2: serial recurrence, fully unrolled over the chunk.
    for s in range(t_chunk):
        def _step(s=s):
            h = h_ref[...]
            c = c_ref[...]
            gates = (xw[s * b_pad:(s + 1) * b_pad, :]
                     + jnp.dot(h.astype(w_hh.dtype), w_hh,
                               preferred_element_type=jnp.float32))  # (Bp, 4Hp)
            # Lane-aligned gate slices (h_pad is a multiple of 128).
            i_g = jax.nn.sigmoid(gates[:, 0 * h_pad:1 * h_pad])
            f_g = jax.nn.sigmoid(gates[:, 1 * h_pad:2 * h_pad])
            g_g = jnp.tanh(gates[:, 2 * h_pad:3 * h_pad])
            o_g = jax.nn.sigmoid(gates[:, 3 * h_pad:4 * h_pad])
            c_new = f_g * c + i_g * g_g
            c_ref[...] = c_new
            h_ref[...] = o_g * jnp.tanh(c_new)

        if ragged:
            # Skip zero-padded tail timesteps of the last chunk.
            pl.when(chunk * t_chunk + s < seq_len)(_step)
        else:
            _step()

    # Epilogue: Linear on the last timestep only (out[:, -1, :] @ W_fc^T + b).
    @pl.when(chunk == n_chunks - 1)
    def _final():
        out_ref[...] = (jnp.dot(h_ref[...], w_fc_ref[...],
                                preferred_element_type=jnp.float32)
                        + b_fc_ref[...])


def _pack_gates_last_axis(w, H, Hp):
    """(..., 4H) -> (..., 4Hp): zero-pad each of the [i,f,g,o] blocks to Hp so
    every gate starts on a 128-lane boundary.  Zero padding keeps the padded
    hidden/cell columns exactly zero for the whole recurrence."""
    parts = []
    pad = [(0, 0)] * (w.ndim - 1) + [(0, Hp - H)]
    for k in range(4):
        parts.append(jnp.pad(w[..., k * H:(k + 1) * H], pad))
    return jnp.concatenate(parts, axis=-1)


def speech_lstm_forward(x, params, *, t_chunk=8, matmul_dtype=jnp.bfloat16):
    """x: (B, T, I) batch-first (PyTorch convention). Returns (B, O)."""
    w_ih, w_hh, b_ih, b_hh, w_fc, b_fc = params
    B, T, I = x.shape
    H = w_hh.shape[1]
    O = w_fc.shape[0]

    Bp = _round_up(B, 8)            # sublane granularity
    Hp = _round_up(H, 128)          # lane-aligned gate blocks
    Op = _round_up(O, 128)          # lane-dense FC output store
    t_chunk = max(1, min(t_chunk, T))
    n_chunks = pl.cdiv(T, t_chunk)
    Tp = n_chunks * t_chunk

    # ---- weight / bias packing (done once in the wrapper) ----
    w_ih_p = _pack_gates_last_axis(jnp.transpose(w_ih).astype(jnp.float32),
                                   H, Hp).astype(matmul_dtype)        # (I, 4Hp)
    w_hh_p = _pack_gates_last_axis(jnp.transpose(w_hh).astype(jnp.float32),
                                   H, Hp)                             # (H, 4Hp)
    w_hh_p = jnp.pad(w_hh_p, ((0, Hp - H), (0, 0))).astype(matmul_dtype)  # (Hp,4Hp)
    b_p = _pack_gates_last_axis((b_ih + b_hh).astype(jnp.float32),
                                H, Hp)[None, :]                       # (1, 4Hp)
    w_fc_p = jnp.pad(jnp.transpose(w_fc).astype(jnp.float32),
                     ((0, Hp - H), (0, Op - O)))                      # (Hp, Op)
    b_fc_p = jnp.pad(b_fc.astype(jnp.float32), (0, Op - O))[None, :]  # (1, Op)

    # ---- x: batch-first -> time-major, pad (T, B), flatten per chunk ----
    x_tbi = jnp.transpose(x, (1, 0, 2)).astype(jnp.float32)           # (T, B, I)
    x_tbi = jnp.pad(x_tbi, ((0, Tp - T), (0, Bp - B), (0, 0)))
    x_in = x_tbi.reshape(n_chunks, t_chunk * Bp, I).astype(matmul_dtype)

    grid_spec = pltpu.PrefetchScalarGridSpec(
        num_scalar_prefetch=0,
        grid=(n_chunks,),
        in_specs=[
            pl.BlockSpec((1, t_chunk * Bp, I), lambda c: (c, 0, 0)),   # x chunk
            pl.BlockSpec((I, 4 * Hp), lambda c: (0, 0)),               # W_ih
            pl.BlockSpec((Hp, 4 * Hp), lambda c: (0, 0)),              # W_hh
            pl.BlockSpec((1, 4 * Hp), lambda c: (0, 0)),               # bias
            pl.BlockSpec((Hp, Op), lambda c: (0, 0)),                  # W_fc
            pl.BlockSpec((1, Op), lambda c: (0, 0)),                   # b_fc
        ],
        out_specs=pl.BlockSpec((Bp, Op), lambda c: (0, 0)),
        scratch_shapes=[pltpu.VMEM((Bp, Hp), jnp.float32),   # h state
                        pltpu.VMEM((Bp, Hp), jnp.float32)],  # c state
    )

    out = pl.pallas_call(
        functools.partial(speech_lstm_kernel, seq_len=T),
        out_shape=jax.ShapeDtypeStruct((Bp, Op), jnp.float32),
        grid_spec=grid_spec,
        compiler_params=pltpu.CompilerParams(
            dimension_semantics=("arbitrary",)),   # serial recurrence over chunks
    )(x_in, w_ih_p, w_hh_p, b_p, w_fc_p, b_fc_p)

    return out[:B, :O]


def speech_lstm_reference(x, params):
    """Pure-JAX f32 reference matching torch.nn.LSTM + Linear semantics."""
    w_ih, w_hh, b_ih, b_hh, w_fc, b_fc = params
    B, T, I = x.shape
    H = w_hh.shape[1]

    def step(carry, x_t):
        h, c = carry
        gates = x_t @ w_ih.T + b_ih + h @ w_hh.T + b_hh
        i_g = jax.nn.sigmoid(gates[:, 0 * H:1 * H])
        f_g = jax.nn.sigmoid(gates[:, 1 * H:2 * H])
        g_g = jnp.tanh(gates[:, 2 * H:3 * H])
        o_g = jax.nn.sigmoid(gates[:, 3 * H:4 * H])
        c_new = f_g * c + i_g * g_g
        h_new = o_g * jnp.tanh(c_new)
        return (h_new, c_new), h_new

    h0 = jnp.zeros((B, H), jnp.float32)
    c0 = jnp.zeros((B, H), jnp.float32)
    (h_T, _), _ = lax.scan(step, (h0, c0), jnp.transpose(x, (1, 0, 2)))
    return h_T @ w_fc.T + b_fc


if __name__ == "__main__":
    # SpeechLSTM(input_size=16, hidden_size=32, output_size=4), batch=2, seq=8
    B, T, I, H, O = 2, 8, 16, 32, 4

    key = jax.random.PRNGKey(0)
    ks = jax.random.split(key, 7)
    scale = 1.0 / jnp.sqrt(H)
    w_ih = jax.random.uniform(ks[0], (4 * H, I), jnp.float32, -scale, scale)
    w_hh = jax.random.uniform(ks[1], (4 * H, H), jnp.float32, -scale, scale)
    b_ih = jax.random.uniform(ks[2], (4 * H,), jnp.float32, -scale, scale)
    b_hh = jax.random.uniform(ks[3], (4 * H,), jnp.float32, -scale, scale)
    w_fc = jax.random.uniform(ks[4], (O, H), jnp.float32, -scale, scale)
    b_fc = jax.random.uniform(ks[5], (O,), jnp.float32, -scale, scale)
    params = (w_ih, w_hh, b_ih, b_hh, w_fc, b_fc)

    x = jax.random.normal(ks[6], (B, T, I), jnp.float32)

    out = jax.block_until_ready(speech_lstm_forward(x, params))
    ref = jax.block_until_ready(speech_lstm_reference(x, params))

    assert out.shape == (B, O)
    # bf16 MXU operands with f32 accumulation -> slightly looser tolerance.
    assert jnp.allclose(out, ref, atol=2e-2, rtol=2e-2), (out, ref)
    print("KERNEL_OK")
</pallas_src>

<mosaic_0001>
module attributes {stable_mosaic.version = 11 : i64} {
  func.func @speech_lstm_kernel(%arg0: i32, %arg1: memref<1x64x16xbf16, #tpu.memory_space<vmem>>, %arg2: memref<16x512xbf16, #tpu.memory_space<vmem>>, %arg3: memref<128x512xbf16, #tpu.memory_space<vmem>>, %arg4: memref<1x512xf32, #tpu.memory_space<vmem>>, %arg5: memref<128x128xf32, #tpu.memory_space<vmem>>, %arg6: memref<1x128xf32, #tpu.memory_space<vmem>>, %arg7: memref<8x128xf32, #tpu.memory_space<vmem>>, %arg8: memref<8x128xf32, #tpu.memory_space<vmem>>, %arg9: memref<8x128xf32, #tpu.memory_space<vmem>>) attributes {dimension_semantics = [#tpu.dimension_semantics<arbitrary>], iteration_bounds = array<i64: 1>, scalar_prefetch = 0 : i64, scratch_operands = 2 : i64, tpu.core_type = #tpu.core_type<tc>, window_params = [{transform_indices = @transform_0, window_bounds = array<i64: 1, 64, 16>}, {pipeline_mode = #tpu.pipeline_mode<synchronous>, transform_indices = @transform_1, window_bounds = array<i64: 16, 512>}, {pipeline_mode = #tpu.pipeline_mode<synchronous>, transform_indices = @transform_2, window_bounds = array<i64: 128, 512>}, {pipeline_mode = #tpu.pipeline_mode<synchronous>, transform_indices = @transform_3, window_bounds = array<i64: 1, 512>}, {pipeline_mode = #tpu.pipeline_mode<synchronous>, transform_indices = @transform_4, window_bounds = array<i64: 128, 128>}, {pipeline_mode = #tpu.pipeline_mode<synchronous>, transform_indices = @transform_5, window_bounds = array<i64: 1, 128>}, {pipeline_mode = #tpu.pipeline_mode<synchronous>, transform_indices = @transform_6, window_bounds = array<i64: 8, 128>}]} {
    %c0_i32 = arith.constant 0 : i32
    %0 = arith.cmpi eq, %arg0, %c0_i32 : i32
    %1 = arith.extui %0 : i1 to i32
    %c0_i32_0 = arith.constant 0 : i32
    %2 = arith.cmpi ne, %1, %c0_i32_0 : i32
    scf.if %2 {
      %cst_107 = arith.constant 0.000000e+00 : f32
      %278 = vector.broadcast %cst_107 : f32 to vector<8x128xf32>
      %c0_108 = arith.constant 0 : index
      %c0_109 = arith.constant 0 : index
      %279 = vector.load %arg8[%c0_108, %c0_109] : memref<8x128xf32, #tpu.memory_space<vmem>>, vector<8x128xf32>
      tpu.vector_store %arg8[%c0_108, %c0_109], %278 {strides = array<i32>} : memref<8x128xf32, #tpu.memory_space<vmem>>, vector<8x128xf32>,
      %cst_110 = arith.constant 0.000000e+00 : f32
      %280 = vector.broadcast %cst_110 : f32 to vector<8x128xf32>
      %c0_111 = arith.constant 0 : index
      %c0_112 = arith.constant 0 : index
      %281 = vector.load %arg9[%c0_111, %c0_112] : memref<8x128xf32, #tpu.memory_space<vmem>>, vector<8x128xf32>
      tpu.vector_store %arg9[%c0_111, %c0_112], %280 {strides = array<i32>} : memref<8x128xf32, #tpu.memory_space<vmem>>, vector<8x128xf32>,
    } else {
    }
    %c0 = arith.constant 0 : index
    %c0_1 = arith.constant 0 : index
    %c0_2 = arith.constant 0 : index
    %3 = vector.load %arg1[%c0, %c0_1, %c0_2] : memref<1x64x16xbf16, #tpu.memory_space<vmem>>, vector<1x64x16xbf16>
    %4 = vector.shape_cast %3 : vector<1x64x16xbf16> to vector<64x16xbf16>
    %c0_3 = arith.constant 0 : index
    %c0_4 = arith.constant 0 : index
    %5 = vector.load %arg2[%c0_3, %c0_4] : memref<16x512xbf16, #tpu.memory_space<vmem>>, vector<16x512xbf16>
    %cst = arith.constant dense<0.000000e+00> : vector<64x512xf32>
    %6 = tpu.matmul %4, %5, %cst {dimension_numbers = #tpu.dot_dimension_numbers<[1], [0], [0], [1], [0, 0, 1, 1], [], []>} : vector<64x16xbf16>, vector<16x512xbf16>, vector<64x512xf32> -> vector<64x512xf32>
    %c0_5 = arith.constant 0 : index
    %c0_6 = arith.constant 0 : index
    %7 = vector.load %arg4[%c0_5, %c0_6] : memref<1x512xf32, #tpu.memory_space<vmem>>, vector<1x512xf32>
    %8 = vector.broadcast %7 : vector<1x512xf32> to vector<64x512xf32>
    %9 = arith.addf %6, %8 : vector<64x512xf32>
    %c0_7 = arith.constant 0 : index
    %c0_8 = arith.constant 0 : index
    %10 = vector.load %arg3[%c0_7, %c0_8] : memref<128x512xbf16, #tpu.memory_space<vmem>>, vector<128x512xbf16>
    %c0_9 = arith.constant 0 : index
    %c0_10 = arith.constant 0 : index
    %11 = vector.load %arg8[%c0_9, %c0_10] : memref<8x128xf32, #tpu.memory_space<vmem>>, vector<8x128xf32>
    %c0_11 = arith.constant 0 : index
    %c0_12 = arith.constant 0 : index
    %12 = vector.load %arg9[%c0_11, %c0_12] : memref<8x128xf32, #tpu.memory_space<vmem>>, vector<8x128xf32>
    %13 = vector.extract_strided_slice %9 {offsets = [0, 0], sizes = [8, 512], strides = [1, 1]} : vector<64x512xf32> to vector<8x512xf32>
    %14 = arith.truncf %11 : vector<8x128xf32> to vector<8x128xbf16>
    %cst_13 = arith.constant dense<0.000000e+00> : vector<8x512xf32>
    %15 = tpu.matmul %14, %10, %cst_13 {dimension_numbers = #tpu.dot_dimension_numbers<[1], [0], [0], [1], [0, 0, 1, 1], [], []>} : vector<8x128xbf16>, vector<128x512xbf16>, vector<8x512xf32> -> vector<8x512xf32>
    %16 = arith.addf %13, %15 : vector<8x512xf32>
    %17 = vector.extract_strided_slice %16 {offsets = [0, 0], sizes = [8, 128], strides = [1, 1]} : vector<8x512xf32> to vector<8x128xf32>
    %18 = arith.negf %17 : vector<8x128xf32>
    %19 = math.exp %18 : vector<8x128xf32>
    %cst_14 = arith.constant 1.000000e+00 : f32
    %20 = vector.broadcast %cst_14 : f32 to vector<8x128xf32>
    %21 = arith.addf %20, %19 : vector<8x128xf32>
    %22 = arith.divf %20, %21 : vector<8x128xf32>
    %23 = vector.extract_strided_slice %16 {offsets = [0, 128], sizes = [8, 128], strides = [1, 1]} : vector<8x512xf32> to vector<8x128xf32>
    %24 = arith.negf %23 : vector<8x128xf32>
    %25 = math.exp %24 : vector<8x128xf32>
    %cst_15 = arith.constant 1.000000e+00 : f32
    %26 = vector.broadcast %cst_15 : f32 to vector<8x128xf32>
    %27 = arith.addf %26, %25 : vector<8x128xf32>
    %28 = arith.divf %26, %27 : vector<8x128xf32>
    %29 = vector.extract_strided_slice %16 {offsets = [0, 256], sizes = [8, 128], strides = [1, 1]} : vector<8x512xf32> to vector<8x128xf32>
    %30 = math.tanh %29 : vector<8x128xf32>
    %31 = vector.extract_strided_slice %16 {offsets = [0, 384], sizes = [8, 128], strides = [1, 1]} : vector<8x512xf32> to vector<8x128xf32>
    %32 = arith.negf %31 : vector<8x128xf32>
    %33 = math.exp %32 : vector<8x128xf32>
    %cst_16 = arith.constant 1.000000e+00 : f32
    %34 = vector.broadcast %cst_16 : f32 to vector<8x128xf32>
    %35 = arith.addf %34, %33 : vector<8x128xf32>
    %36 = arith.divf %34, %35 : vector<8x128xf32>
    %37 = arith.mulf %28, %12 : vector<8x128xf32>
    %38 = arith.mulf %22, %30 : vector<8x128xf32>
    %39 = arith.addf %37, %38 : vector<8x128xf32>
    %c0_17 = arith.constant 0 : index
    %c0_18 = arith.constant 0 : index
    %40 = vector.load %arg9[%c0_17, %c0_18] : memref<8x128xf32, #tpu.memory_space<vmem>>, vector<8x128xf32>
    tpu.vector_store %arg9[%c0_17, %c0_18], %39 {strides = array<i32>} : memref<8x128xf32, #tpu.memory_space<vmem>>, vector<8x128xf32>,
    %41 = math.tanh %39 : vector<8x128xf32>
    %42 = arith.mulf %36, %41 : vector<8x128xf32>
    %c0_19 = arith.constant 0 : index
    %c0_20 = arith.constant 0 : index
    %43 = vector.load %arg8[%c0_19, %c0_20] : memref<8x128xf32, #tpu.memory_space<vmem>>, vector<8x128xf32>
    tpu.vector_store %arg8[%c0_19, %c0_20], %42 {strides = array<i32>} : memref<8x128xf32, #tpu.memory_space<vmem>>, vector<8x128xf32>,
    %c0_21 = arith.constant 0 : index
    %c0_22 = arith.constant 0 : index
    %44 = vector.load %arg8[%c0_21, %c0_22] : memref<8x128xf32, #tpu.memory_space<vmem>>, vector<8x128xf32>
    %c0_23 = arith.constant 0 : index
    %c0_24 = arith.constant 0 : index
    %45 = vector.load %arg9[%c0_23, %c0_24] : memref<8x128xf32, #tpu.memory_space<vmem>>, vector<8x128xf32>
    %46 = vector.extract_strided_slice %9 {offsets = [8, 0], sizes = [8, 512], strides = [1, 1]} : vector<64x512xf32> to vector<8x512xf32>
    %47 = arith.truncf %44 : vector<8x128xf32> to vector<8x128xbf16>
    %cst_25 = arith.constant dense<0.000000e+00> : vector<8x512xf32>
    %48 = tpu.matmul %47, %10, %cst_25 {dimension_numbers = #tpu.dot_dimension_numbers<[1], [0], [0], [1], [0, 0, 1, 1], [], []>} : vector<8x128xbf16>, vector<128x512xbf16>, vector<8x512xf32> -> vector<8x512xf32>
    %49 = arith.addf %46, %48 : vector<8x512xf32>
    %50 = vector.extract_strided_slice %49 {offsets = [0, 0], sizes = [8, 128], strides = [1, 1]} : vector<8x512xf32> to vector<8x128xf32>
    %51 = arith.negf %50 : vector<8x128xf32>
    %52 = math.exp %51 : vector<8x128xf32>
    %cst_26 = arith.constant 1.000000e+00 : f32
    %53 = vector.broadcast %cst_26 : f32 to vector<8x128xf32>
    %54 = arith.addf %53, %52 : vector<8x128xf32>
    %55 = arith.divf %53, %54 : vector<8x128xf32>
    %56 = vector.extract_strided_slice %49 {offsets = [0, 128], sizes = [8, 128], strides = [1, 1]} : vector<8x512xf32> to vector<8x128xf32>
    %57 = arith.negf %56 : vector<8x128xf32>
    %58 = math.exp %57 : vector<8x128xf32>
    %cst_27 = arith.constant 1.000000e+00 : f32
    %59 = vector.broadcast %cst_27 : f32 to vector<8x128xf32>
    %60 = arith.addf %59, %58 : vector<8x128xf32>
    %61 = arith.divf %59, %60 : vector<8x128xf32>
    %62 = vector.extract_strided_slice %49 {offsets = [0, 256], sizes = [8, 128], strides = [1, 1]} : vector<8x512xf32> to vector<8x128xf32>
    %63 = math.tanh %62 : vector<8x128xf32>
    %64 = vector.extract_strided_slice %49 {offsets = [0, 384], sizes = [8, 128], strides = [1, 1]} : vector<8x512xf32> to vector<8x128xf32>
    %65 = arith.negf %64 : vector<8x128xf32>
    %66 = math.exp %65 : vector<8x128xf32>
    %cst_28 = arith.constant 1.000000e+00 : f32
    %67 = vector.broadcast %cst_28 : f32 to vector<8x128xf32>
    %68 = arith.addf %67, %66 : vector<8x128xf32>
    %69 = arith.divf %67, %68 : vector<8x128xf32>
    %70 = arith.mulf %61, %45 : vector<8x128xf32>
    %71 = arith.mulf %55, %63 : vector<8x128xf32>
    %72 = arith.addf %70, %71 : vector<8x128xf32>
    %c0_29 = arith.constant 0 : index
    %c0_30 = arith.constant 0 : index
    %73 = vector.load %arg9[%c0_29, %c0_30] : memref<8x128xf32, #tpu.memory_space<vmem>>, vector<8x128xf32>
    tpu.vector_store %arg9[%c0_29, %c0_30], %72 {strides = array<i32>} : memref<8x128xf32, #tpu.memory_space<vmem>>, vector<8x128xf32>,
    %74 = math.tanh %72 : vector<8x128xf32>
    %75 = arith.mulf %69, %74 : vector<8x128xf32>
    %c0_31 = arith.constant 0 : index
    %c0_32 = arith.constant 0 : index
    %76 = vector.load %arg8[%c0_31, %c0_32] : memref<8x128xf32, #tpu.memory_space<vmem>>, vector<8x128xf32>
    tpu.vector_store %arg8[%c0_31, %c0_32], %75 {strides = array<i32>} : memref<8x128xf32, #tpu.memory_space<vmem>>, vector<8x128xf32>,
    %c0_33 = arith.constant 0 : index
    %c0_34 = arith.constant 0 : index
    %77 = vector.load %arg8[%c0_33, %c0_34] : memref<8x128xf32, #tpu.memory_space<vmem>>, vector<8x128xf32>
    %c0_35 = arith.constant 0 : index
    %c0_36 = arith.constant 0 : index
    %78 = vector.load %arg9[%c0_35, %c0_36] : memref<8x128xf32, #tpu.memory_space<vmem>>, vector<8x128xf32>
    %79 = vector.extract_strided_slice %9 {offsets = [16, 0], sizes = [8, 512], strides = [1, 1]} : vector<64x512xf32> to vector<8x512xf32>
    %80 = arith.truncf %77 : vector<8x128xf32> to vector<8x128xbf16>
    %cst_37 = arith.constant dense<0.000000e+00> : vector<8x512xf32>
    %81 = tpu.matmul %80, %10, %cst_37 {dimension_numbers = #tpu.dot_dimension_numbers<[1], [0], [0], [1], [0, 0, 1, 1], [], []>} : vector<8x128xbf16>, vector<128x512xbf16>, vector<8x512xf32> -> vector<8x512xf32>
    %82 = arith.addf %79, %81 : vector<8x512xf32>
    %83 = vector.extract_strided_slice %82 {offsets = [0, 0], sizes = [8, 128], strides = [1, 1]} : vector<8x512xf32> to vector<8x128xf32>
    %84 = arith.negf %83 : vector<8x128xf32>
    %85 = math.exp %84 : vector<8x128xf32>
    %cst_38 = arith.constant 1.000000e+00 : f32
    %86 = vector.broadcast %cst_38 : f32 to vector<8x128xf32>
    %87 = arith.addf %86, %85 : vector<8x128xf32>
    %88 = arith.divf %86, %87 : vector<8x128xf32>
    %89 = vector.extract_strided_slice %82 {offsets = [0, 128], sizes = [8, 128], strides = [1, 1]} : vector<8x512xf32> to vector<8x128xf32>
    %90 = arith.negf %89 : vector<8x128xf32>
    %91 = math.exp %90 : vector<8x128xf32>
    %cst_39 = arith.constant 1.000000e+00 : f32
    %92 = vector.broadcast %cst_39 : f32 to vector<8x128xf32>
    %93 = arith.addf %92, %91 : vector<8x128xf32>
    %94 = arith.divf %92, %93 : vector<8x128xf32>
    %95 = vector.extract_strided_slice %82 {offsets = [0, 256], sizes = [8, 128], strides = [1, 1]} : vector<8x512xf32> to vector<8x128xf32>
    %96 = math.tanh %95 : vector<8x128xf32>
    %97 = vector.extract_strided_slice %82 {offsets = [0, 384], sizes = [8, 128], strides = [1, 1]} : vector<8x512xf32> to vector<8x128xf32>
    %98 = arith.negf %97 : vector<8x128xf32>
    %99 = math.exp %98 : vector<8x128xf32>
    %cst_40 = arith.constant 1.000000e+00 : f32
    %100 = vector.broadcast %cst_40 : f32 to vector<8x128xf32>
    %101 = arith.addf %100, %99 : vector<8x128xf32>
    %102 = arith.divf %100, %101 : vector<8x128xf32>
    %103 = arith.mulf %94, %78 : vector<8x128xf32>
    %104 = arith.mulf %88, %96 : vector<8x128xf32>
    %105 = arith.addf %103, %104 : vector<8x128xf32>
    %c0_41 = arith.constant 0 : index
    %c0_42 = arith.constant 0 : index
    %106 = vector.load %arg9[%c0_41, %c0_42] : memref<8x128xf32, #tpu.memory_space<vmem>>, vector<8x128xf32>
    tpu.vector_store %arg9[%c0_41, %c0_42], %105 {strides = array<i32>} : memref<8x128xf32, #tpu.memory_space<vmem>>, vector<8x128xf32>,
    %107 = math.tanh %105 : vector<8x128xf32>
    %108 = arith.mulf %102, %107 : vector<8x128xf32>
    %c0_43 = arith.constant 0 : index
    %c0_44 = arith.constant 0 : index
    %109 = vector.load %arg8[%c0_43, %c0_44] : memref<8x128xf32, #tpu.memory_space<vmem>>, vector<8x128xf32>
    tpu.vector_store %arg8[%c0_43, %c0_44], %108 {strides = array<i32>} : memref<8x128xf32, #tpu.memory_space<vmem>>, vector<8x128xf32>,
    %c0_45 = arith.constant 0 : index
    %c0_46 = arith.constant 0 : index
    %110 = vector.load %arg8[%c0_45, %c0_46] : memref<8x128xf32, #tpu.memory_space<vmem>>, vector<8x128xf32>
    %c0_47 = arith.constant 0 : index
    %c0_48 = arith.constant 0 : index
    %111 = vector.load %arg9[%c0_47, %c0_48] : memref<8x128xf32, #tpu.memory_space<vmem>>, vector<8x128xf32>
    %112 = vector.extract_strided_slice %9 {offsets = [24, 0], sizes = [8, 512], strides = [1, 1]} : vector<64x512xf32> to vector<8x512xf32>
    %113 = arith.truncf %110 : vector<8x128xf32> to vector<8x128xbf16>
    %cst_49 = arith.constant dense<0.000000e+00> : vector<8x512xf32>
    %114 = tpu.matmul %113, %10, %cst_49 {dimension_numbers = #tpu.dot_dimension_numbers<[1], [0], [0], [1], [0, 0, 1, 1], [], []>} : vector<8x128xbf16>, vector<128x512xbf16>, vector<8x512xf32> -> vector<8x512xf32>
    %115 = arith.addf %112, %114 : vector<8x512xf32>
    %116 = vector.extract_strided_slice %115 {offsets = [0, 0], sizes = [8, 128], strides = [1, 1]} : vector<8x512xf32> to vector<8x128xf32>
    %117 = arith.negf %116 : vector<8x128xf32>
    %118 = math.exp %117 : vector<8x128xf32>
    %cst_50 = arith.constant 1.000000e+00 : f32
    %119 = vector.broadcast %cst_50 : f32 to vector<8x128xf32>
    %120 = arith.addf %119, %118 : vector<8x128xf32>
    %121 = arith.divf %119, %120 : vector<8x128xf32>
    %122 = vector.extract_strided_slice %115 {offsets = [0, 128], sizes = [8, 128], strides = [1, 1]} : vector<8x512xf32> to vector<8x128xf32>
    %123 = arith.negf %122 : vector<8x128xf32>
    %124 = math.exp %123 : vector<8x128xf32>
    %cst_51 = arith.constant 1.000000e+00 : f32
    %125 = vector.broadcast %cst_51 : f32 to vector<8x128xf32>
    %126 = arith.addf %125, %124 : vector<8x128xf32>
    %127 = arith.divf %125, %126 : vector<8x128xf32>
    %128 = vector.extract_strided_slice %115 {offsets = [0, 256], sizes = [8, 128], strides = [1, 1]} : vector<8x512xf32> to vector<8x128xf32>
    %129 = math.tanh %128 : vector<8x128xf32>
    %130 = vector.extract_strided_slice %115 {offsets = [0, 384], sizes = [8, 128], strides = [1, 1]} : vector<8x512xf32> to vector<8x128xf32>
    %131 = arith.negf %130 : vector<8x128xf32>
    %132 = math.exp %131 : vector<8x128xf32>
    %cst_52 = arith.constant 1.000000e+00 : f32
    %133 = vector.broadcast %cst_52 : f32 to vector<8x128xf32>
    %134 = arith.addf %133, %132 : vector<8x128xf32>
    %135 = arith.divf %133, %134 : vector<8x128xf32>
    %136 = arith.mulf %127, %111 : vector<8x128xf32>
    %137 = arith.mulf %121, %129 : vector<8x128xf32>
    %138 = arith.addf %136, %137 : vector<8x128xf32>
    %c0_53 = arith.constant 0 : index
    %c0_54 = arith.constant 0 : index
    %139 = vector.load %arg9[%c0_53, %c0_54] : memref<8x128xf32, #tpu.memory_space<vmem>>, vector<8x128xf32>
    tpu.vector_store %arg9[%c0_53, %c0_54], %138 {strides = array<i32>} : memref<8x128xf32, #tpu.memory_space<vmem>>, vector<8x128xf32>,
    %140 = math.tanh %138 : vector<8x128xf32>
    %141 = arith.mulf %135, %140 : vector<8x128xf32>
    %c0_55 = arith.constant 0 : index
    %c0_56 = arith.constant 0 : index
    %142 = vector.load %arg8[%c0_55, %c0_56] : memref<8x128xf32, #tpu.memory_space<vmem>>, vector<8x128xf32>
    tpu.vector_store %arg8[%c0_55, %c0_56], %141 {strides = array<i32>} : memref<8x128xf32, #tpu.memory_space<vmem>>, vector<8x128xf32>,
    %c0_57 = arith.constant 0 : index
    %c0_58 = arith.constant 0 : index
    %143 = vector.load %arg8[%c0_57, %c0_58] : memref<8x128xf32, #tpu.memory_space<vmem>>, vector<8x128xf32>
    %c0_59 = arith.constant 0 : index
    %c0_60 = arith.constant 0 : index
    %144 = vector.load %arg9[%c0_59, %c0_60] : memref<8x128xf32, #tpu.memory_space<vmem>>, vector<8x128xf32>
    %145 = vector.extract_strided_slice %9 {offsets = [32, 0], sizes = [8, 512], strides = [1, 1]} : vector<64x512xf32> to vector<8x512xf32>
    %146 = arith.truncf %143 : vector<8x128xf32> to vector<8x128xbf16>
    %cst_61 = arith.constant dense<0.000000e+00> : vector<8x512xf32>
    %147 = tpu.matmul %146, %10, %cst_61 {dimension_numbers = #tpu.dot_dimension_numbers<[1], [0], [0], [1], [0, 0, 1, 1], [], []>} : vector<8x128xbf16>, vector<128x512xbf16>, vector<8x512xf32> -> vector<8x512xf32>
    %148 = arith.addf %145, %147 : vector<8x512xf32>
    %149 = vector.extract_strided_slice %148 {offsets = [0, 0], sizes = [8, 128], strides = [1, 1]} : vector<8x512xf32> to vector<8x128xf32>
    %150 = arith.negf %149 : vector<8x128xf32>
    %151 = math.exp %150 : vector<8x128xf32>
    %cst_62 = arith.constant 1.000000e+00 : f32
    %152 = vector.broadcast %cst_62 : f32 to vector<8x128xf32>
    %153 = arith.addf %152, %151 : vector<8x128xf32>
    %154 = arith.divf %152, %153 : vector<8x128xf32>
    %155 = vector.extract_strided_slice %148 {offsets = [0, 128], sizes = [8, 128], strides = [1, 1]} : vector<8x512xf32> to vector<8x128xf32>
    %156 = arith.negf %155 : vector<8x128xf32>
    %157 = math.exp %156 : vector<8x128xf32>
    %cst_63 = arith.constant 1.000000e+00 : f32
    %158 = vector.broadcast %cst_63 : f32 to vector<8x128xf32>
    %159 = arith.addf %158, %157 : vector<8x128xf32>
    %160 = arith.divf %158, %159 : vector<8x128xf32>
    %161 = vector.extract_strided_slice %148 {offsets = [0, 256], sizes = [8, 128], strides = [1, 1]} : vector<8x512xf32> to vector<8x128xf32>
    %162 = math.tanh %161 : vector<8x128xf32>
    %163 = vector.extract_strided_slice %148 {offsets = [0, 384], sizes = [8, 128], strides = [1, 1]} : vector<8x512xf32> to vector<8x128xf32>
    %164 = arith.negf %163 : vector<8x128xf32>
    %165 = math.exp %164 : vector<8x128xf32>
    %cst_64 = arith.constant 1.000000e+00 : f32
    %166 = vector.broadcast %cst_64 : f32 to vector<8x128xf32>
    %167 = arith.addf %166, %165 : vector<8x128xf32>
    %168 = arith.divf %166, %167 : vector<8x128xf32>
    %169 = arith.mulf %160, %144 : vector<8x128xf32>
    %170 = arith.mulf %154, %162 : vector<8x128xf32>
    %171 = arith.addf %169, %170 : vector<8x128xf32>
    %c0_65 = arith.constant 0 : index
    %c0_66 = arith.constant 0 : index
    %172 = vector.load %arg9[%c0_65, %c0_66] : memref<8x128xf32, #tpu.memory_space<vmem>>, vector<8x128xf32>
    tpu.vector_store %arg9[%c0_65, %c0_66], %171 {strides = array<i32>} : memref<8x128xf32, #tpu.memory_space<vmem>>, vector<8x128xf32>,
    %173 = math.tanh %171 : vector<8x128xf32>
    %174 = arith.mulf %168, %173 : vector<8x128xf32>
    %c0_67 = arith.constant 0 : index
    %c0_68 = arith.constant 0 : index
    %175 = vector.load %arg8[%c0_67, %c0_68] : memref<8x128xf32, #tpu.memory_space<vmem>>, vector<8x128xf32>
    tpu.vector_store %arg8[%c0_67, %c0_68], %174 {strides = array<i32>} : memref<8x128xf32, #tpu.memory_space<vmem>>, vector<8x128xf32>,
    %c0_69 = arith.constant 0 : index
    %c0_70 = arith.constant 0 : index
    %176 = vector.load %arg8[%c0_69, %c0_70] : memref<8x128xf32, #tpu.memory_space<vmem>>, vector<8x128xf32>
    %c0_71 = arith.constant 0 : index
    %c0_72 = arith.constant 0 : index
    %177 = vector.load %arg9[%c0_71, %c0_72] : memref<8x128xf32, #tpu.memory_space<vmem>>, vector<8x128xf32>
    %178 = vector.extract_strided_slice %9 {offsets = [40, 0], sizes = [8, 512], strides = [1, 1]} : vector<64x512xf32> to vector<8x512xf32>
    %179 = arith.truncf %176 : vector<8x128xf32> to vector<8x128xbf16>
    %cst_73 = arith.constant dense<0.000000e+00> : vector<8x512xf32>
    %180 = tpu.matmul %179, %10, %cst_73 {dimension_numbers = #tpu.dot_dimension_numbers<[1], [0], [0], [1], [0, 0, 1, 1], [], []>} : vector<8x128xbf16>, vector<128x512xbf16>, vector<8x512xf32> -> vector<8x512xf32>
    %181 = arith.addf %178, %180 : vector<8x512xf32>
    %182 = vector.extract_strided_slice %181 {offsets = [0, 0], sizes = [8, 128], strides = [1, 1]} : vector<8x512xf32> to vector<8x128xf32>
    %183 = arith.negf %182 : vector<8x128xf32>
    %184 = math.exp %183 : vector<8x128xf32>
    %cst_74 = arith.constant 1.000000e+00 : f32
    %185 = vector.broadcast %cst_74 : f32 to vector<8x128xf32>
    %186 = arith.addf %185, %184 : vector<8x128xf32>
    %187 = arith.divf %185, %186 : vector<8x128xf32>
    %188 = vector.extract_strided_slice %181 {offsets = [0, 128], sizes = [8, 128], strides = [1, 1]} : vector<8x512xf32> to vector<8x128xf32>
    %189 = arith.negf %188 : vector<8x128xf32>
    %190 = math.exp %189 : vector<8x128xf32>
    %cst_75 = arith.constant 1.000000e+00 : f32
    %191 = vector.broadcast %cst_75 : f32 to vector<8x128xf32>
    %192 = arith.addf %191, %190 : vector<8x128xf32>
    %193 = arith.divf %191, %192 : vector<8x128xf32>
    %194 = vector.extract_strided_slice %181 {offsets = [0, 256], sizes = [8, 128], strides = [1, 1]} : vector<8x512xf32> to vector<8x128xf32>
    %195 = math.tanh %194 : vector<8x128xf32>
    %196 = vector.extract_strided_slice %181 {offsets = [0, 384], sizes = [8, 128], strides = [1, 1]} : vector<8x512xf32> to vector<8x128xf32>
    %197 = arith.negf %196 : vector<8x128xf32>
    %198 = math.exp %197 : vector<8x128xf32>
    %cst_76 = arith.constant 1.000000e+00 : f32
    %199 = vector.broadcast %cst_76 : f32 to vector<8x128xf32>
    %200 = arith.addf %199, %198 : vector<8x128xf32>
    %201 = arith.divf %199, %200 : vector<8x128xf32>
    %202 = arith.mulf %193, %177 : vector<8x128xf32>
    %203 = arith.mulf %187, %195 : vector<8x128xf32>
    %204 = arith.addf %202, %203 : vector<8x128xf32>
    %c0_77 = arith.constant 0 : index
    %c0_78 = arith.constant 0 : index
    %205 = vector.load %arg9[%c0_77, %c0_78] : memref<8x128xf32, #tpu.memory_space<vmem>>, vector<8x128xf32>
    tpu.vector_store %arg9[%c0_77, %c0_78], %204 {strides = array<i32>} : memref<8x128xf32, #tpu.memory_space<vmem>>, vector<8x128xf32>,
    %206 = math.tanh %204 : vector<8x128xf32>
    %207 = arith.mulf %201, %206 : vector<8x128xf32>
    %c0_79 = arith.constant 0 : index
    %c0_80 = arith.constant 0 : index
    %208 = vector.load %arg8[%c0_79, %c0_80] : memref<8x128xf32, #tpu.memory_space<vmem>>, vector<8x128xf32>
    tpu.vector_store %arg8[%c0_79, %c0_80], %207 {strides = array<i32>} : memref<8x128xf32, #tpu.memory_space<vmem>>, vector<8x128xf32>,
    %c0_81 = arith.constant 0 : index
    %c0_82 = arith.constant 0 : index
    %209 = vector.load %arg8[%c0_81, %c0_82] : memref<8x128xf32, #tpu.memory_space<vmem>>, vector<8x128xf32>
    %c0_83 = arith.constant 0 : index
    %c0_84 = arith.constant 0 : index
    %210 = vector.load %arg9[%c0_83, %c0_84] : memref<8x128xf32, #tpu.memory_space<vmem>>, vector<8x128xf32>
    %211 = vector.extract_strided_slice %9 {offsets = [48, 0], sizes = [8, 512], strides = [1, 1]} : vector<64x512xf32> to vector<8x512xf32>
    %212 = arith.truncf %209 : vector<8x128xf32> to vector<8x128xbf16>
    %cst_85 = arith.constant dense<0.000000e+00> : vector<8x512xf32>
    %213 = tpu.matmul %212, %10, %cst_85 {dimension_numbers = #tpu.dot_dimension_numbers<[1], [0], [0], [1], [0, 0, 1, 1], [], []>} : vector<8x128xbf16>, vector<128x512xbf16>, vector<8x512xf32> -> vector<8x512xf32>
    %214 = arith.addf %211, %213 : vector<8x512xf32>
    %215 = vector.extract_strided_slice %214 {offsets = [0, 0], sizes = [8, 128], strides = [1, 1]} : vector<8x512xf32> to vector<8x128xf32>
    %216 = arith.negf %215 : vector<8x128xf32>
    %217 = math.exp %216 : vector<8x128xf32>
    %cst_86 = arith.constant 1.000000e+00 : f32
    %218 = vector.broadcast %cst_86 : f32 to vector<8x128xf32>
    %219 = arith.addf %218, %217 : vector<8x128xf32>
    %220 = arith.divf %218, %219 : vector<8x128xf32>
    %221 = vector.extract_strided_slice %214 {offsets = [0, 128], sizes = [8, 128], strides = [1, 1]} : vector<8x512xf32> to vector<8x128xf32>
    %222 = arith.negf %221 : vector<8x128xf32>
    %223 = math.exp %222 : vector<8x128xf32>
    %cst_87 = arith.constant 1.000000e+00 : f32
    %224 = vector.broadcast %cst_87 : f32 to vector<8x128xf32>
    %225 = arith.addf %224, %223 : vector<8x128xf32>
    %226 = arith.divf %224, %225 : vector<8x128xf32>
    %227 = vector.extract_strided_slice %214 {offsets = [0, 256], sizes = [8, 128], strides = [1, 1]} : vector<8x512xf32> to vector<8x128xf32>
    %228 = math.tanh %227 : vector<8x128xf32>
    %229 = vector.extract_strided_slice %214 {offsets = [0, 384], sizes = [8, 128], strides = [1, 1]} : vector<8x512xf32> to vector<8x128xf32>
    %230 = arith.negf %229 : vector<8x128xf32>
    %231 = math.exp %230 : vector<8x128xf32>
    %cst_88 = arith.constant 1.000000e+00 : f32
    %232 = vector.broadcast %cst_88 : f32 to vector<8x128xf32>
    %233 = arith.addf %232, %231 : vector<8x128xf32>
    %234 = arith.divf %232, %233 : vector<8x128xf32>
    %235 = arith.mulf %226, %210 : vector<8x128xf32>
    %236 = arith.mulf %220, %228 : vector<8x128xf32>
    %237 = arith.addf %235, %236 : vector<8x128xf32>
    %c0_89 = arith.constant 0 : index
    %c0_90 = arith.constant 0 : index
    %238 = vector.load %arg9[%c0_89, %c0_90] : memref<8x128xf32, #tpu.memory_space<vmem>>, vector<8x128xf32>
    tpu.vector_store %arg9[%c0_89, %c0_90], %237 {strides = array<i32>} : memref<8x128xf32, #tpu.memory_space<vmem>>, vector<8x128xf32>,
    %239 = math.tanh %237 : vector<8x128xf32>
    %240 = arith.mulf %234, %239 : vector<8x128xf32>
    %c0_91 = arith.constant 0 : index
    %c0_92 = arith.constant 0 : index
    %241 = vector.load %arg8[%c0_91, %c0_92] : memref<8x128xf32, #tpu.memory_space<vmem>>, vector<8x128xf32>
    tpu.vector_store %arg8[%c0_91, %c0_92], %240 {strides = array<i32>} : memref<8x128xf32, #tpu.memory_space<vmem>>, vector<8x128xf32>,
    %c0_93 = arith.constant 0 : index
    %c0_94 = arith.constant 0 : index
    %242 = vector.load %arg8[%c0_93, %c0_94] : memref<8x128xf32, #tpu.memory_space<vmem>>, vector<8x128xf32>
    %c0_95 = arith.constant 0 : index
    %c0_96 = arith.constant 0 : index
    %243 = vector.load %arg9[%c0_95, %c0_96] : memref<8x128xf32, #tpu.memory_space<vmem>>, vector<8x128xf32>
    %244 = vector.extract_strided_slice %9 {offsets = [56, 0], sizes = [8, 512], strides = [1, 1]} : vector<64x512xf32> to vector<8x512xf32>
    %245 = arith.truncf %242 : vector<8x128xf32> to vector<8x128xbf16>
    %cst_97 = arith.constant dense<0.000000e+00> : vector<8x512xf32>
    %246 = tpu.matmul %245, %10, %cst_97 {dimension_numbers = #tpu.dot_dimension_numbers<[1], [0], [0], [1], [0, 0, 1, 1], [], []>} : vector<8x128xbf16>, vector<128x512xbf16>, vector<8x512xf32> -> vector<8x512xf32>
    %247 = arith.addf %244, %246 : vector<8x512xf32>
    %248 = vector.extract_strided_slice %247 {offsets = [0, 0], sizes = [8, 128], strides = [1, 1]} : vector<8x512xf32> to vector<8x128xf32>
    %249 = arith.negf %248 : vector<8x128xf32>
    %250 = math.exp %249 : vector<8x128xf32>
    %cst_98 = arith.constant 1.000000e+00 : f32
    %251 = vector.broadcast %cst_98 : f32 to vector<8x128xf32>
    %252 = arith.addf %251, %250 : vector<8x128xf32>
    %253 = arith.divf %251, %252 : vector<8x128xf32>
    %254 = vector.extract_strided_slice %247 {offsets = [0, 128], sizes = [8, 128], strides = [1, 1]} : vector<8x512xf32> to vector<8x128xf32>
    %255 = arith.negf %254 : vector<8x128xf32>
    %256 = math.exp %255 : vector<8x128xf32>
    %cst_99 = arith.constant 1.000000e+00 : f32
    %257 = vector.broadcast %cst_99 : f32 to vector<8x128xf32>
    %258 = arith.addf %257, %256 : vector<8x128xf32>
    %259 = arith.divf %257, %258 : vector<8x128xf32>
    %260 = vector.extract_strided_slice %247 {offsets = [0, 256], sizes = [8, 128], strides = [1, 1]} : vector<8x512xf32> to vector<8x128xf32>
    %261 = math.tanh %260 : vector<8x128xf32>
    %262 = vector.extract_strided_slice %247 {offsets = [0, 384], sizes = [8, 128], strides = [1, 1]} : vector<8x512xf32> to vector<8x128xf32>
    %263 = arith.negf %262 : vector<8x128xf32>
    %264 = math.exp %263 : vector<8x128xf32>
    %cst_100 = arith.constant 1.000000e+00 : f32
    %265 = vector.broadcast %cst_100 : f32 to vector<8x128xf32>
    %266 = arith.addf %265, %264 : vector<8x128xf32>
    %267 = arith.divf %265, %266 : vector<8x128xf32>
    %268 = arith.mulf %259, %243 : vector<8x128xf32>
    %269 = arith.mulf %253, %261 : vector<8x128xf32>
    %270 = arith.addf %268, %269 : vector<8x128xf32>
    %c0_101 = arith.constant 0 : index
    %c0_102 = arith.constant 0 : index
    %271 = vector.load %arg9[%c0_101, %c0_102] : memref<8x128xf32, #tpu.memory_space<vmem>>, vector<8x128xf32>
    tpu.vector_store %arg9[%c0_101, %c0_102], %270 {strides = array<i32>} : memref<8x128xf32, #tpu.memory_space<vmem>>, vector<8x128xf32>,
    %272 = math.tanh %270 : vector<8x128xf32>
    %273 = arith.mulf %267, %272 : vector<8x128xf32>
    %c0_103 = arith.constant 0 : index
    %c0_104 = arith.constant 0 : index
    %274 = vector.load %arg8[%c0_103, %c0_104] : memref<8x128xf32, #tpu.memory_space<vmem>>, vector<8x128xf32>
    tpu.vector_store %arg8[%c0_103, %c0_104], %273 {strides = array<i32>} : memref<8x128xf32, #tpu.memory_space<vmem>>, vector<8x128xf32>,
    %c0_i32_105 = arith.constant 0 : i32
    %275 = arith.cmpi eq, %arg0, %c0_i32_105 : i32
    %276 = arith.extui %275 : i1 to i32
    %c0_i32_106 = arith.constant 0 : i32
    %277 = arith.cmpi ne, %276, %c0_i32_106 : i32
    scf.if %277 {
      %c0_107 = arith.constant 0 : index
      %c0_108 = arith.constant 0 : index
      %278 = vector.load %arg8[%c0_107, %c0_108] : memref<8x128xf32, #tpu.memory_space<vmem>>, vector<8x128xf32>
      %c0_109 = arith.constant 0 : index
      %c0_110 = arith.constant 0 : index
      %279 = vector.load %arg5[%c0_109, %c0_110] : memref<128x128xf32, #tpu.memory_space<vmem>>, vector<128x128xf32>
      %cst_111 = arith.constant dense<0.000000e+00> : vector<8x128xf32>
      %280 = tpu.matmul %278, %279, %cst_111 {dimension_numbers = #tpu.dot_dimension_numbers<[1], [0], [0], [1], [0, 0, 1, 1], [], []>} : vector<8x128xf32>, vector<128x128xf32>, vector<8x128xf32> -> vector<8x128xf32>
      %c0_112 = arith.constant 0 : index
      %c0_113 = arith.constant 0 : index
      %281 = vector.load %arg6[%c0_112, %c0_113] : memref<1x128xf32, #tpu.memory_space<vmem>>, vector<1x128xf32>
      %282 = vector.broadcast %281 : vector<1x128xf32> to vector<8x128xf32>
      %283 = arith.addf %280, %282 : vector<8x128xf32>
      %c0_114 = arith.constant 0 : index
      %c0_115 = arith.constant 0 : index
      %284 = vector.load %arg7[%c0_114, %c0_115] : memref<8x128xf32, #tpu.memory_space<vmem>>, vector<8x128xf32>
      tpu.vector_store %arg7[%c0_114, %c0_115], %283 {strides = array<i32>} : memref<8x128xf32, #tpu.memory_space<vmem>>, vector<8x128xf32>,
    } else {
    }
    return
  }
  func.func @transform_0(%arg0: i32) -> (i32, i32, i32) {
    %c0_i32 = arith.constant 0 : i32
    %c0_i32_0 = arith.constant 0 : i32
    %c0_i32_1 = arith.constant 0 : i32
    return %arg0, %c0_i32, %c0_i32_0 : i32, i32, i32
  }
  func.func @transform_1(%arg0: i32) -> (i32, i32) {
    %c0_i32 = arith.constant 0 : i32
    %c0_i32_0 = arith.constant 0 : i32
    %c0_i32_1 = arith.constant 0 : i32
    return %c0_i32, %c0_i32_0 : i32, i32
  }
  func.func @transform_2(%arg0: i32) -> (i32, i32) {
    %c0_i32 = arith.constant 0 : i32
    %c0_i32_0 = arith.constant 0 : i32
    %c0_i32_1 = arith.constant 0 : i32
    return %c0_i32, %c0_i32_0 : i32, i32
  }
  func.func @transform_3(%arg0: i32) -> (i32, i32) {
    %c0_i32 = arith.constant 0 : i32
    %c0_i32_0 = arith.constant 0 : i32
    %c0_i32_1 = arith.constant 0 : i32
    return %c0_i32, %c0_i32_0 : i32, i32
  }
  func.func @transform_4(%arg0: i32) -> (i32, i32) {
    %c0_i32 = arith.constant 0 : i32
    %c0_i32_0 = arith.constant 0 : i32
    %c0_i32_1 = arith.constant 0 : i32
    return %c0_i32, %c0_i32_0 : i32, i32
  }
  func.func @transform_5(%arg0: i32) -> (i32, i32) {
    %c0_i32 = arith.constant 0 : i32
    %c0_i32_0 = arith.constant 0 : i32
    %c0_i32_1 = arith.constant 0 : i32
    return %c0_i32, %c0_i32_0 : i32, i32
  }
  func.func @transform_6(%arg0: i32) -> (i32, i32) {
    %c0_i32 = arith.constant 0 : i32
    %c0_i32_0 = arith.constant 0 : i32
    %c0_i32_1 = arith.constant 0 : i32
    return %c0_i32, %c0_i32_0 : i32, i32
  }
}

</mosaic_0001>

<llo_original>
// kernel: tpu_custom_call.1
$region0: #{tpu_custom_call.1}
  #allocation0 [shape = 'u32[]', space=smem, size = 0x4, offset = 0x4, fixed_abs, tag = 'smem constant byte address 0x4 - core index']
  #allocation1 [shape = 'u32[144,128]{1,0:T(1,128)}', space=vmem, size = 0x12000, scoped, tag = 'internal scratch']
  #allocation2 [shape = 'f32[8,128]{1,0:T(8,128)}', space=vmem, size = 0x1000, scoped, tag = 'scratch operand']
  #allocation3 [shape = 'f32[8,128]{1,0:T(8,128)}', space=vmem, size = 0x1000, scoped, tag = 'scratch operand']
  %s0 = inlined_call_operand.vmem [shape: bf16[1,64,16], index: 0, kind: input, shape index: {}]
  %s1 = inlined_call_operand.vmem [shape: bf16[16,512], index: 1, kind: input, shape index: {}]
  %s2 = inlined_call_operand.hbm [shape: bf16[128,512], index: 2, kind: input, shape index: {}]
  %s3 = inlined_call_operand.vmem [shape: f32[1,512], index: 3, kind: input, shape index: {}]
  %s4 = inlined_call_operand.hbm [shape: f32[128,128], index: 4, kind: input, shape index: {}]
  %s5 = inlined_call_operand.vmem [shape: f32[1,128], index: 5, kind: input, shape index: {}]
  %s6 = inlined_call_operand.hbm [shape: f32[8,128], index: 6, kind: output, shape index: {}]
  %s7 = sld [smem:[#allocation0]]
  $region50: #{tpu_custom_call.1} parent=0
    _
  %s9 = ssub.s32 1, %s7
  %s10 = scalar_select 0, %s9, %s7
  $region1: #{tpu_custom_call.1} parent=0
    #allocation4 [shape = 'u8[131072]{0}', space=vmem, size = 0x20000, scoped, tag = 'input window, operand 2, single buffered']
    #allocation5 [shape = 's32[1]{0}', space=sflag, size = 0x4, scoped, tag = 'scoped memory for tpu_custom_call.1']
    #allocation6 [shape = 's32[1]{0}', space=sflag, size = 0x4, scoped, tag = 'scoped memory for tpu_custom_call.1']
    #allocation7 [shape = 'u8[65536]{0}', space=vmem, size = 0x10000, scoped, tag = 'input window, operand 4, single buffered']
    #allocation8 [shape = 's32[1]{0}', space=sflag, size = 0x4, scoped, tag = 'scoped memory for tpu_custom_call.1']
    #allocation9 [shape = 'u8[4096]{0}', space=vmem, size = 0x1000, scoped, tag = 'output window, operand 0, single buffered']
    %11 = vsyncpa [#allocation5], 0
    %12 = vsyncpa [#allocation8], 0
    %13 = vsyncpa [#allocation6], 0
    // Predicated region
    $region2: #{tpu_custom_call.1} parent=1 // pred_check
      _
    $region3: #{tpu_custom_call.1} parent=1 // pred_check_branch
      %15 = sbr.rel (0) target = $region5
    $region4: #{tpu_custom_call.1} parent=1 // pred_region
      _
    $region5: #{tpu_custom_call.1} parent=1 // pred_fallthru
      _
    // Predicated region
    $region6: #{tpu_custom_call.1} parent=1 // pred_check
      _
    $region7: #{tpu_custom_call.1} parent=1 // pred_check_branch
      %17 = sbr.rel (0) target = $region9
    $region8: #{tpu_custom_call.1} parent=1 // pred_region
      _
    $region9: #{tpu_custom_call.1} parent=1 // pred_fallthru
      _
    // Predicated region
    $region10: #{tpu_custom_call.1} parent=1 // pred_check
      _
    $region11: #{tpu_custom_call.1} parent=1 // pred_check_branch
      %19 = sbr.rel (0) target = $region13
    $region12: #{tpu_custom_call.1} parent=1 // pred_region
      %s21 = ssub.s32 4096, 4096
      %22 = vsyncadd [#allocation5], %s21
      %s23 = sshll.u32 [#allocation4], 4
      %s24 = int_to_ptr.vmem [resolvable:$true] %s23
      %29 = dma.hbm_to_vmem [thread:$0]  %s2, 4096, %s24, [#allocation5], 256, 256, 16
    $region13: #{tpu_custom_call.1} parent=1 // pred_fallthru
      _
    // Predicated region
    $region14: #{tpu_custom_call.1} parent=1 // pred_check
      _
    $region15: #{tpu_custom_call.1} parent=1 // pred_check_branch
      %31 = sbr.rel (0) target = $region17
    $region16: #{tpu_custom_call.1} parent=1 // pred_region
      _
    $region17: #{tpu_custom_call.1} parent=1 // pred_fallthru
      _
    // Predicated region
    $region18: #{tpu_custom_call.1} parent=1 // pred_check
      _
    $region19: #{tpu_custom_call.1} parent=1 // pred_check_branch
      %33 = sbr.rel (0) target = $region21
    $region20: #{tpu_custom_call.1} parent=1 // pred_region
      %s35 = ssub.s32 2048, 2048
      %36 = vsyncadd [#allocation8], %s35
      %s37 = sshll.u32 [#allocation7], 4
      %s38 = int_to_ptr.vmem [resolvable:$true] %s37
      %43 = dma.hbm_to_vmem [thread:$0]  %s4, 2048, %s38, [#allocation8], 128, 128, 8
    $region21: #{tpu_custom_call.1} parent=1 // pred_fallthru
      _
    // Predicated region
    $region22: #{tpu_custom_call.1} parent=1 // pred_check
      _
    $region23: #{tpu_custom_call.1} parent=1 // pred_check_branch
      %45 = sbr.rel (0) target = $region25
    $region24: #{tpu_custom_call.1} parent=1 // pred_region
      _
    $region25: #{tpu_custom_call.1} parent=1 // pred_fallthru
      _
    // Predicated region
    $region26: #{tpu_custom_call.1} parent=1 // pred_check
      _
    $region27: #{tpu_custom_call.1} parent=1 // pred_check_branch
      %47 = sbr.rel (0) target = $region29
    $region28: #{tpu_custom_call.1} parent=1 // pred_region
      %48 = dma.done [#allocation5], 4096
    $region29: #{tpu_custom_call.1} parent=1 // pred_fallthru
      _
    // Predicated region
    $region30: #{tpu_custom_call.1} parent=1 // pred_check
      _
    $region31: #{tpu_custom_call.1} parent=1 // pred_check_branch
      %50 = sbr.rel (0) target = $region33
    $region32: #{tpu_custom_call.1} parent=1 // pred_region
      %51 = dma.done [#allocation8], 2048
    $region33: #{tpu_custom_call.1} parent=1 // pred_fallthru
      _
    %p53 = scmp.eq.s32.totalorder 0, 0
    // Predicated region
    $region34: #{tpu_custom_call.1} parent=1 // pred_check
      %p54 = pneg %p53
    $region35: #{tpu_custom_call.1} parent=1 // pred_check_branch
      %56 = sbr.rel (%p54) target = $region37
    $region36: #{tpu_custom_call.1} parent=1 // pred_region
      %57 = vst [vmem:[#allocation2] sm:$0xff] 0.0
      %58 = vst [vmem:[#allocation3] sm:$0xff] 0.0
    $region37: #{tpu_custom_call.1} parent=1 // pred_fallthru
      _
    %v59 = vld [vmem:[%s0] sm:$0xf]
    %v60 = vld [vmem:[%s0 + $0x4] sm:$0xf]
    %v61 = vld [vmem:[%s0 + $0x8] sm:$0xf]
    %v62 = vld [vmem:[%s0 + $0xc] sm:$0xf]
    %v63 = vld [vmem:[%s0 + $0x10] sm:$0xf]
    %v64 = vld [vmem:[%s0 + $0x14] sm:$0xf]
    %v65 = vld [vmem:[%s0 + $0x18] sm:$0xf]
    %v66 = vld [vmem:[%s0 + $0x1c] sm:$0xf]
    %v67 = vld [vmem:[%s1] sm:$0xff]
    %v68 = vld [vmem:[%s1 + $0x8] sm:$0xff]
    %v69 = vld [vmem:[%s1 + $0x10] sm:$0xff]
    %v70 = vld [vmem:[%s1 + $0x18] sm:$0xff]
    %v71 = vld [vmem:[%s3] sm:$0xf]
    %v73 = vlaneseq
    %v74 = vshrl.u32 %v73, 7
    %v75 = vsub.s32 0, %v74
    %v76 = vrot.slane %v71, %v75
    %v77 = vlaneseq
    %v78 = vshrl.u32 %v77, 7
    %v79 = vsub.s32 1, %v78
    %v80 = vrot.slane %v71, %v79
    %v81 = vlaneseq
    %v82 = vshrl.u32 %v81, 7
    %v83 = vsub.s32 2, %v82
    %v84 = vrot.slane %v71, %v83
    %v85 = vlaneseq
    %v86 = vshrl.u32 %v85, 7
    %v87 = vsub.s32 3, %v86
    %v88 = vrot.slane %v71, %v87
    %v101 = vunpack.c.l.b16 %v59
    %v102 = vunpack.c.l.b16 %v60
    %v103 = vunpack.c.l.b16 %v61
    %v104 = vunpack.c.l.b16 %v62
    %v105 = vunpack.c.l.b16 %v63
    %v106 = vunpack.c.l.b16 %v64
    %v107 = vunpack.c.l.b16 %v65
    %v108 = vunpack.c.l.b16 %v66
    %v109 = vpack.c.b16 %v102, %v101
    %v110 = vpack.c.b16 %v104, %v103
    %v111 = vpack.c.b16 %v106, %v105
    %v112 = vpack.c.b16 %v108, %v107
    %v117 = vunpack.c.l.b16 %v67
    %v118 = vunpack.c.h.b16 %v67
    %v119 = vunpack.c.l.b16 %v68
    %v120 = vunpack.c.h.b16 %v68
    %v121 = vunpack.c.l.b16 %v69
    %v122 = vunpack.c.h.b16 %v69
    %v123 = vunpack.c.l.b16 %v70
    %v124 = vunpack.c.h.b16 %v70
    %v125 = vpack.c.b16 %v121, %v117
    %v126 = vpack.c.b16 %v122, %v118
    %v127 = vpack.c.b16 %v123, %v119
    %v128 = vpack.c.b16 %v124, %v120
    %vm133 = vcmask 130048
    %v135 = vsel %vm133, %v109, 0
    %v138 = vsel %vm133, %v110, 0
    %v141 = vsel %vm133, %v111, 0
    %v144 = vsel %vm133, %v112, 0
    %146 = vmatprep.subr.bf16.mxu0 0
    %147 = vmatpush1.bf16.msra.mxu0 0
    %148 = vmatprep.subr.bf16.mxu0 0
    %149 = vmatpush1.bf16.msra.mxu0 0
    %150 = vmatprep.subr.bf16.mxu0 0
    %151 = vmatpush1.bf16.msra.mxu0 0
    %152 = vmatprep.subr.bf16.mxu0 0
    %153 = vmatpush1.bf16.msra.mxu0 0
    %154 = vmatprep.subr.bf16.mxu0 0
    %155 = vmatpush1.bf16.msra.mxu0 0
    %156 = vmatprep.subr.bf16.mxu0 0
    %157 = vmatpush1.bf16.msra.mxu0 0
    %158 = vmatprep.subr.bf16.mxu0 0
    %159 = vmatpush1.bf16.msra.mxu0 0
    %160 = vmatprep.subr.bf16.mxu0 %v126
    %161 = vmatpush1.bf16.msra.mxu0 %v125
    %162 = vmatprep.subr.bf16.mxu0 0
    %163 = vmatpush2.bf16.msra.mxu0 0
    %164 = vmatprep.subr.bf16.mxu0 0
    %165 = vmatpush2.bf16.msra.mxu0 0
    %166 = vmatprep.subr.bf16.mxu0 0
    %167 = vmatpush2.bf16.msra.mxu0 0
    %168 = vmatprep.subr.bf16.mxu0 0
    %169 = vmatpush2.bf16.msra.mxu0 0
    %170 = vmatprep.subr.bf16.mxu0 0
    %171 = vmatpush2.bf16.msra.mxu0 0
    %172 = vmatprep.subr.bf16.mxu0 0
    %173 = vmatpush2.bf16.msra.mxu0 0
    %174 = vmatprep.subr.bf16.mxu0 0
    %175 = vmatpush2.bf16.msra.mxu0 0
    %176 = vmatprep.subr.bf16.mxu0 0
    %177 = vmatpush2.bf16.msra.mxu0 0
    %178 = vmatprep.mubr.bf16.mxu0 0
    %179 = vmatmul.mubr.bf16.gmra.mxu0 %v135
    %v180 = vpop.f32.mrf.mxu0
    %v181 = vadd.f32 %v76, %v180
    %v182 = vpop.f32.mrf.mxu0
    %v183 = vadd.f32 %v80, %v182
    %v184 = vpop.f32.mrf.mxu0
    %v185 = vadd.f32 %v76, %v184
    %v186 = vpop.f32.mrf.mxu0
    %v187 = vadd.f32 %v80, %v186
    %188 = vmatprep.mubr.bf16.mxu0 0
    %189 = vmatmul.mubr.bf16.gmra.mxu0 %v138
    %v190 = vpop.f32.mrf.mxu0
    %v191 = vadd.f32 %v76, %v190
    %v192 = vpop.f32.mrf.mxu0
    %v193 = vadd.f32 %v80, %v192
    %v194 = vpop.f32.mrf.mxu0
    %v195 = vadd.f32 %v76, %v194
    %v196 = vpop.f32.mrf.mxu0
    %v197 = vadd.f32 %v80, %v196
    %198 = vmatprep.mubr.bf16.mxu0 0
    %199 = vmatmul.mubr.bf16.gmra.mxu0 %v141
    %v200 = vpop.f32.mrf.mxu0
    %v201 = vadd.f32 %v76, %v200
    %v202 = vpop.f32.mrf.mxu0
    %v203 = vadd.f32 %v80, %v202
    %v204 = vpop.f32.mrf.mxu0
    %v205 = vadd.f32 %v76, %v204
    %v206 = vpop.f32.mrf.mxu0
    %v207 = vadd.f32 %v80, %v206
    %208 = vmatprep.mubr.bf16.mxu0 0
    %209 = vmatmul.mubr.bf16.gmra.mxu0 %v144
    %v210 = vpop.f32.mrf.mxu0
    %v211 = vadd.f32 %v76, %v210
    %v212 = vpop.f32.mrf.mxu0
    %v213 = vadd.f32 %v80, %v212
    %v214 = vpop.f32.mrf.mxu0
    %v215 = vadd.f32 %v76, %v214
    %v216 = vpop.f32.mrf.mxu0
    %v217 = vadd.f32 %v80, %v216
    %218 = vdwg.mxu0
    %219 = vmatprep.subr.bf16.mxu0 0
    %220 = vmatpush1.bf16.msra.mxu0 0
    %221 = vmatprep.subr.bf16.mxu0 0
    %222 = vmatpush1.bf16.msra.mxu0 0
    %223 = vmatprep.subr.bf16.mxu0 0
    %224 = vmatpush1.bf16.msra.mxu0 0
    %225 = vmatprep.subr.bf16.mxu0 0
    %226 = vmatpush1.bf16.msra.mxu0 0
    %227 = vmatprep.subr.bf16.mxu0 0
    %228 = vmatpush1.bf16.msra.mxu0 0
    %229 = vmatprep.subr.bf16.mxu0 0
    %230 = vmatpush1.bf16.msra.mxu0 0
    %231 = vmatprep.subr.bf16.mxu0 0
    %232 = vmatpush1.bf16.msra.mxu0 0
    %233 = vmatprep.subr.bf16.mxu0 %v128
    %234 = vmatpush1.bf16.msra.mxu0 %v127
    %235 = vmatprep.subr.bf16.mxu0 0
    %236 = vmatpush2.bf16.msra.mxu0 0
    %237 = vmatprep.subr.bf16.mxu0 0
    %238 = vmatpush2.bf16.msra.mxu0 0
    %239 = vmatprep.subr.bf16.mxu0 0
    %240 = vmatpush2.bf16.msra.mxu0 0
    %241 = vmatprep.subr.bf16.mxu0 0
    %242 = vmatpush2.bf16.msra.mxu0 0
    %243 = vmatprep.subr.bf16.mxu0 0
    %244 = vmatpush2.bf16.msra.mxu0 0
    %245 = vmatprep.subr.bf16.mxu0 0
    %246 = vmatpush2.bf16.msra.mxu0 0
    %247 = vmatprep.subr.bf16.mxu0 0
    %248 = vmatpush2.bf16.msra.mxu0 0
    %249 = vmatprep.subr.bf16.mxu0 0
    %250 = vmatpush2.bf16.msra.mxu0 0
    %251 = vmatprep.mubr.bf16.mxu0 0
    %252 = vmatmul.mubr.bf16.gmra.mxu0 %v135
    %v253 = vpop.f32.mrf.mxu0
    %v254 = vadd.f32 %v84, %v253
    %v255 = vpop.f32.mrf.mxu0
    %v256 = vadd.f32 %v88, %v255
    %v257 = vpop.f32.mrf.mxu0
    %v258 = vadd.f32 %v84, %v257
    %v259 = vpop.f32.mrf.mxu0
    %v260 = vadd.f32 %v88, %v259
    %261 = vmatprep.mubr.bf16.mxu0 0
    %262 = vmatmul.mubr.bf16.gmra.mxu0 %v138
    %v263 = vpop.f32.mrf.mxu0
    %v264 = vadd.f32 %v84, %v263
    %v265 = vpop.f32.mrf.mxu0
    %v266 = vadd.f32 %v88, %v265
    %v267 = vpop.f32.mrf.mxu0
    %v268 = vadd.f32 %v84, %v267
    %v269 = vpop.f32.mrf.mxu0
    %v270 = vadd.f32 %v88, %v269
    %271 = vmatprep.mubr.bf16.mxu0 0
    %272 = vmatmul.mubr.bf16.gmra.mxu0 %v141
    %v273 = vpop.f32.mrf.mxu0
    %v274 = vadd.f32 %v84, %v273
    %v275 = vpop.f32.mrf.mxu0
    %v276 = vadd.f32 %v88, %v275
    %v277 = vpop.f32.mrf.mxu0
    %v278 = vadd.f32 %v84, %v277
    %v279 = vpop.f32.mrf.mxu0
    %v280 = vadd.f32 %v88, %v279
    %281 = vmatprep.mubr.bf16.mxu0 0
    %282 = vmatmul.mubr.bf16.gmra.mxu0 %v144
    %v283 = vpop.f32.mrf.mxu0
    %v284 = vadd.f32 %v84, %v283
    %v285 = vpop.f32.mrf.mxu0
    %v286 = vadd.f32 %v88, %v285
    %v287 = vpop.f32.mrf.mxu0
    %v288 = vadd.f32 %v84, %v287
    %v289 = vpop.f32.mrf.mxu0
    %v290 = vadd.f32 %v88, %v289
    %291 = vdwg.mxu0
    %v292 = vld [vmem:[#allocation4] sm:$0xff]
    %v293 = vld [vmem:[#allocation4 + $0x8] sm:$0xff]
    %v294 = vld [vmem:[#allocation4 + $0x10] sm:$0xff]
    %v295 = vld [vmem:[#allocation4 + $0x18] sm:$0xff]
    %v296 = vld [vmem:[#allocation4 + $0x20] sm:$0xff]
    %v297 = vld [vmem:[#allocation4 + $0x28] sm:$0xff]
    %v298 = vld [vmem:[#allocation4 + $0x30] sm:$0xff]
    %v299 = vld [vmem:[#allocation4 + $0x38] sm:$0xff]
    %v300 = vld [vmem:[#allocation4 + $0x40] sm:$0xff]
    %v301 = vld [vmem:[#allocation4 + $0x48] sm:$0xff]
    %v302 = vld [vmem:[#allocation4 + $0x50] sm:$0xff]
    %v303 = vld [vmem:[#allocation4 + $0x58] sm:$0xff]
    %v304 = vld [vmem:[#allocation4 + $0x60] sm:$0xff]
    %v305 = vld [vmem:[#allocation4 + $0x68] sm:$0xff]
    %v306 = vld [vmem:[#allocation4 + $0x70] sm:$0xff]
    %v307 = vld [vmem:[#allocation4 + $0x78] sm:$0xff]
    %v308 = vld [vmem:[#allocation4 + $0x80] sm:$0xff]
    %v309 = vld [vmem:[#allocation4 + $0x88] sm:$0xff]
    %v310 = vld [vmem:[#allocation4 + $0x90] sm:$0xff]
    %v311 = vld [vmem:[#allocation4 + $0x98] sm:$0xff]
    %v312 = vld [vmem:[#allocation4 + $0xa0] sm:$0xff]
    %v313 = vld [vmem:[#allocation4 + $0xa8] sm:$0xff]
    %v314 = vld [vmem:[#allocation4 + $0xb0] sm:$0xff]
    %v315 = vld [vmem:[#allocation4 + $0xb8] sm:$0xff]
    %v316 = vld [vmem:[#allocation4 + $0xc0] sm:$0xff]
    %v317 = vld [vmem:[#allocation4 + $0xc8] sm:$0xff]
    %v318 = vld [vmem:[#allocation4 + $0xd0] sm:$0xff]
    %v319 = vld [vmem:[#allocation4 + $0xd8] sm:$0xff]
    %v320 = vld [vmem:[#allocation4 + $0xe0] sm:$0xff]
    %v321 = vld [vmem:[#allocation4 + $0xe8] sm:$0xff]
    %v322 = vld [vmem:[#allocation4 + $0xf0] sm:$0xff]
    %v323 = vld [vmem:[#allocation4 + $0xf8] sm:$0xff]
    %v324 = vld [vmem:[#allocation2] sm:$0xff]
    %v325 = vld [vmem:[#allocation3] sm:$0xff]
    %v326 = vpack.c.bf16 %v324, %v324
    %v359 = vunpack.c.l.b16 %v292
    %v360 = vunpack.c.h.b16 %v292
    %v361 = vunpack.c.l.b16 %v293
    %v362 = vunpack.c.h.b16 %v293
    %v363 = vunpack.c.l.b16 %v294
    %v364 = vunpack.c.h.b16 %v294
    %v365 = vunpack.c.l.b16 %v295
    %v366 = vunpack.c.h.b16 %v295
    %v367 = vunpack.c.l.b16 %v296
    %v368 = vunpack.c.h.b16 %v296
    %v369 = vunpack.c.l.b16 %v297
    %v370 = vunpack.c.h.b16 %v297
    %v371 = vunpack.c.l.b16 %v298
    %v372 = vunpack.c.h.b16 %v298
    %v373 = vunpack.c.l.b16 %v299
    %v374 = vunpack.c.h.b16 %v299
    %v375 = vunpack.c.l.b16 %v300
    %v376 = vunpack.c.h.b16 %v300
    %v377 = vunpack.c.l.b16 %v301
    %v378 = vunpack.c.h.b16 %v301
    %v379 = vunpack.c.l.b16 %v302
    %v380 = vunpack.c.h.b16 %v302
    %v381 = vunpack.c.l.b16 %v303
    %v382 = vunpack.c.h.b16 %v303
    %v383 = vunpack.c.l.b16 %v304
    %v384 = vunpack.c.h.b16 %v304
    %v385 = vunpack.c.l.b16 %v305
    %v386 = vunpack.c.h.b16 %v305
    %v387 = vunpack.c.l.b16 %v306
    %v388 = vunpack.c.h.b16 %v306
    %v389 = vunpack.c.l.b16 %v307
    %v390 = vunpack.c.h.b16 %v307
    %v391 = vunpack.c.l.b16 %v308
    %v392 = vunpack.c.h.b16 %v308
    %v393 = vunpack.c.l.b16 %v309
    %v394 = vunpack.c.h.b16 %v309
    %v395 = vunpack.c.l.b16 %v310
    %v396 = vunpack.c.h.b16 %v310
    %v397 = vunpack.c.l.b16 %v311
    %v398 = vunpack.c.h.b16 %v311
    %v399 = vunpack.c.l.b16 %v312
    %v400 = vunpack.c.h.b16 %v312
    %v401 = vunpack.c.l.b16 %v313
    %v402 = vunpack.c.h.b16 %v313
    %v403 = vunpack.c.l.b16 %v314
    %v404 = vunpack.c.h.b16 %v314
    %v405 = vunpack.c.l.b16 %v315
    %v406 = vunpack.c.h.b16 %v315
    %v407 = vunpack.c.l.b16 %v316
    %v408 = vunpack.c.h.b16 %v316
    %v409 = vunpack.c.l.b16 %v317
    %v410 = vunpack.c.h.b16 %v317
    %v411 = vunpack.c.l.b16 %v318
    %v412 = vunpack.c.h.b16 %v318
    %v413 = vunpack.c.l.b16 %v319
    %v414 = vunpack.c.h.b16 %v319
    %v415 = vunpack.c.l.b16 %v320
    %v416 = vunpack.c.h.b16 %v320
    %v417 = vunpack.c.l.b16 %v321
    %v418 = vunpack.c.h.b16 %v321
    %v419 = vunpack.c.l.b16 %v322
    %v420 = vunpack.c.h.b16 %v322
    %v421 = vunpack.c.l.b16 %v323
    %v422 = vunpack.c.h.b16 %v323
    %v423 = vpack.c.b16 %v363, %v359
    %v424 = vpack.c.b16 %v364, %v360
    %v425 = vpack.c.b16 %v365, %v361
    %v426 = vpack.c.b16 %v366, %v362
    %v427 = vpack.c.b16 %v371, %v367
    %v428 = vpack.c.b16 %v372, %v368
    %v429 = vpack.c.b16 %v373, %v369
    %v430 = vpack.c.b16 %v374, %v370
    %v431 = vpack.c.b16 %v379, %v375
    %v432 = vpack.c.b16 %v380, %v376
    %v433 = vpack.c.b16 %v381, %v377
    %v434 = vpack.c.b16 %v382, %v378
    %v435 = vpack.c.b16 %v387, %v383
    %v436 = vpack.c.b16 %v388, %v384
    %v437 = vpack.c.b16 %v389, %v385
    %v438 = vpack.c.b16 %v390, %v386
    %v439 = vpack.c.b16 %v395, %v391
    %v440 = vpack.c.b16 %v396, %v392
    %v441 = vpack.c.b16 %v397, %v393
    %v442 = vpack.c.b16 %v398, %v394
    %v443 = vpack.c.b16 %v403, %v399
    %v444 = vpack.c.b16 %v404, %v400
    %v445 = vpack.c.b16 %v405, %v401
    %v446 = vpack.c.b16 %v406, %v402
    %v447 = vpack.c.b16 %v411, %v407
    %v448 = vpack.c.b16 %v412, %v408
    %v449 = vpack.c.b16 %v413, %v409
    %v450 = vpack.c.b16 %v414, %v410
    %v451 = vpack.c.b16 %v419, %v415
    %v452 = vpack.c.b16 %v420, %v416
    %v453 = vpack.c.b16 %v421, %v417
    %v454 = vpack.c.b16 %v422, %v418
    %487 = vmatprep.subr.bf16.mxu0 %v452
    %488 = vmatpush1.bf16.msra.mxu0 %v451
    %489 = vmatprep.subr.bf16.mxu0 %v448
    %490 = vmatpush1.bf16.msra.mxu0 %v447
    %491 = vmatprep.subr.bf16.mxu0 %v444
    %492 = vmatpush1.bf16.msra.mxu0 %v443
    %493 = vmatprep.subr.bf16.mxu0 %v440
    %494 = vmatpush1.bf16.msra.mxu0 %v439
    %495 = vmatprep.subr.bf16.mxu0 %v436
    %496 = vmatpush1.bf16.msra.mxu0 %v435
    %497 = vmatprep.subr.bf16.mxu0 %v432
    %498 = vmatpush1.bf16.msra.mxu0 %v431
    %499 = vmatprep.subr.bf16.mxu0 %v428
    %500 = vmatpush1.bf16.msra.mxu0 %v427
    %501 = vmatprep.subr.bf16.mxu0 %v424
    %502 = vmatpush1.bf16.msra.mxu0 %v423
    %503 = vmatprep.subr.bf16.mxu0 0
    %504 = vmatpush2.bf16.msra.mxu0 0
    %505 = vmatprep.subr.bf16.mxu0 0
    %506 = vmatpush2.bf16.msra.mxu0 0
    %507 = vmatprep.subr.bf16.mxu0 0
    %508 = vmatpush2.bf16.msra.mxu0 0
    %509 = vmatprep.subr.bf16.mxu0 0
    %510 = vmatpush2.bf16.msra.mxu0 0
    %511 = vmatprep.subr.bf16.mxu0 0
    %512 = vmatpush2.bf16.msra.mxu0 0
    %513 = vmatprep.subr.bf16.mxu0 0
    %514 = vmatpush2.bf16.msra.mxu0 0
    %515 = vmatprep.subr.bf16.mxu0 0
    %516 = vmatpush2.bf16.msra.mxu0 0
    %517 = vmatprep.subr.bf16.mxu0 0
    %518 = vmatpush2.bf16.msra.mxu0 0
    %519 = vmatprep.mubr.bf16.mxu0 0
    %520 = vmatmul.mubr.bf16.gmra.mxu0 %v326
    %v521 = vpop.f32.mrf.mxu0
    %v522 = vadd.f32 0.0, %v521
    %v523 = vpop.f32.mrf.mxu0
    %v524 = vadd.f32 0.0, %v523
    %v525 = vpop.f32.mrf.mxu0
    %v526 = vpop.f32.mrf.mxu0
    %527 = vdwg.mxu0
    %528 = vmatprep.subr.bf16.mxu0 %v454
    %529 = vmatpush1.bf16.msra.mxu0 %v453
    %530 = vmatprep.subr.bf16.mxu0 %v450
    %531 = vmatpush1.bf16.msra.mxu0 %v449
    %532 = vmatprep.subr.bf16.mxu0 %v446
    %533 = vmatpush1.bf16.msra.mxu0 %v445
    %534 = vmatprep.subr.bf16.mxu0 %v442
    %535 = vmatpush1.bf16.msra.mxu0 %v441
    %536 = vmatprep.subr.bf16.mxu0 %v438
    %537 = vmatpush1.bf16.msra.mxu0 %v437
    %538 = vmatprep.subr.bf16.mxu0 %v434
    %539 = vmatpush1.bf16.msra.mxu0 %v433
    %540 = vmatprep.subr.bf16.mxu0 %v430
    %541 = vmatpush1.bf16.msra.mxu0 %v429
    %542 = vmatprep.subr.bf16.mxu0 %v426
    %543 = vmatpush1.bf16.msra.mxu0 %v425
    %544 = vmatprep.subr.bf16.mxu0 0
    %545 = vmatpush2.bf16.msra.mxu0 0
    %546 = vmatprep.subr.bf16.mxu0 0
    %547 = vmatpush2.bf16.msra.mxu0 0
    %548 = vmatprep.subr.bf16.mxu0 0
    %549 = vmatpush2.bf16.msra.mxu0 0
    %550 = vmatprep.subr.bf16.mxu0 0
    %551 = vmatpush2.bf16.msra.mxu0 0
    %552 = vmatprep.subr.bf16.mxu0 0
    %553 = vmatpush2.bf16.msra.mxu0 0
    %554 = vmatprep.subr.bf16.mxu0 0
    %555 = vmatpush2.bf16.msra.mxu0 0
    %556 = vmatprep.subr.bf16.mxu0 0
    %557 = vmatpush2.bf16.msra.mxu0 0
    %558 = vmatprep.subr.bf16.mxu0 0
    %559 = vmatpush2.bf16.msra.mxu0 0
    %560 = vmatprep.mubr.bf16.mxu0 0
    %561 = vmatmul.mubr.bf16.gmra.mxu0 %v326
    %v562 = vpop.f32.mrf.mxu0
    %v563 = vadd.f32 0.0, %v562
    %v564 = vpop.f32.mrf.mxu0
    %v565 = vadd.f32 0.0, %v564
    %v566 = vpop.f32.mrf.mxu0
    %v567 = vpop.f32.mrf.mxu0
    %568 = vdwg.mxu0
    %v569 = vadd.f32 %v181, %v522
    %v570 = vadd.f32 %v183, %v524
    %v571 = vadd.f32 %v254, %v563
    %v572 = vadd.f32 %v256, %v565
    %v573 = vxor.u32 %v569, 2147483648
    %v574 = vmul.f32 %v573, 1.442695
    %v575 = vpow.pop %v574
    %v576 = vadd.f32 %v575, 1.0
    %v577 = vrcp.pop %v576
    %v578 = vmul.f32 1.0, %v577
    %v579 = vxor.u32 %v570, 2147483648
    %v580 = vmul.f32 %v579, 1.442695
    %v581 = vpow.pop %v580
    %v582 = vadd.f32 %v581, 1.0
    %v583 = vrcp.pop %v582
    %v584 = vmul.f32 1.0, %v583
    %v585 = vtanh.pop %v571
    %v586 = vxor.u32 %v572, 2147483648
    %v587 = vmul.f32 %v586, 1.442695
    %v588 = vpow.pop %v587
    %v589 = vadd.f32 %v588, 1.0
    %v590 = vrcp.pop %v589
    %v591 = vmul.f32 1.0, %v590
    %v592 = vmul.f32 %v584, %v325
    %v593 = vmul.f32 %v578, %v585
    %v594 = vadd.f32 %v592, %v593
    %595 = vst [vmem:[#allocation3] sm:$0xff] %v594
    %v596 = vtanh.pop %v594
    %v597 = vmul.f32 %v591, %v596
    %598 = vst [vmem:[#allocation2] sm:$0xff] %v597
    %v599 = vld [vmem:[#allocation2] sm:$0xff]
    %v600 = vld [vmem:[#allocation3] sm:$0xff]
    %v601 = vpack.c.bf16 %v599, %v599
    %602 = vmatprep.subr.bf16.mxu0 %v452
    %603 = vmatpush1.bf16.msra.mxu0 %v451
    %604 = vmatprep.subr.bf16.mxu0 %v448
    %605 = vmatpush1.bf16.msra.mxu0 %v447
    %606 = vmatprep.subr.bf16.mxu0 %v444
    %607 = vmatpush1.bf16.msra.mxu0 %v443
    %608 = vmatprep.subr.bf16.mxu0 %v440
    %609 = vmatpush1.bf16.msra.mxu0 %v439
    %610 = vmatprep.subr.bf16.mxu0 %v436
    %611 = vmatpush1.bf16.msra.mxu0 %v435
    %612 = vmatprep.subr.bf16.mxu0 %v432
    %613 = vmatpush1.bf16.msra.mxu0 %v431
    %614 = vmatprep.subr.bf16.mxu0 %v428
    %615 = vmatpush1.bf16.msra.mxu0 %v427
    %616 = vmatprep.subr.bf16.mxu0 %v424
    %617 = vmatpush1.bf16.msra.mxu0 %v423
    %618 = vmatprep.subr.bf16.mxu0 0
    %619 = vmatpush2.bf16.msra.mxu0 0
    %620 = vmatprep.subr.bf16.mxu0 0
    %621 = vmatpush2.bf16.msra.mxu0 0
    %622 = vmatprep.subr.bf16.mxu0 0
    %623 = vmatpush2.bf16.msra.mxu0 0
    %624 = vmatprep.subr.bf16.mxu0 0
    %625 = vmatpush2.bf16.msra.mxu0 0
    %626 = vmatprep.subr.bf16.mxu0 0
    %627 = vmatpush2.bf16.msra.mxu0 0
    %628 = vmatprep.subr.bf16.mxu0 0
    %629 = vmatpush2.bf16.msra.mxu0 0
    %630 = vmatprep.subr.bf16.mxu0 0
    %631 = vmatpush2.bf16.msra.mxu0 0
    %632 = vmatprep.subr.bf16.mxu0 0
    %633 = vmatpush2.bf16.msra.mxu0 0
    %634 = vmatprep.mubr.bf16.mxu0 0
    %635 = vmatmul.mubr.bf16.gmra.mxu0 %v601
    %v636 = vpop.f32.mrf.mxu0
    %v637 = vadd.f32 0.0, %v636
    %v638 = vpop.f32.mrf.mxu0
    %v639 = vadd.f32 0.0, %v638
    %v640 = vpop.f32.mrf.mxu0
    %v641 = vpop.f32.mrf.mxu0
    %642 = vdwg.mxu0
    %643 = vmatprep.subr.bf16.mxu0 %v454
    %644 = vmatpush1.bf16.msra.mxu0 %v453
    %645 = vmatprep.subr.bf16.mxu0 %v450
    %646 = vmatpush1.bf16.msra.mxu0 %v449
    %647 = vmatprep.subr.bf16.mxu0 %v446
    %648 = vmatpush1.bf16.msra.mxu0 %v445
    %649 = vmatprep.subr.bf16.mxu0 %v442
    %650 = vmatpush1.bf16.msra.mxu0 %v441
    %651 = vmatprep.subr.bf16.mxu0 %v438
    %652 = vmatpush1.bf16.msra.mxu0 %v437
    %653 = vmatprep.subr.bf16.mxu0 %v434
    %654 = vmatpush1.bf16.msra.mxu0 %v433
    %655 = vmatprep.subr.bf16.mxu0 %v430
    %656 = vmatpush1.bf16.msra.mxu0 %v429
    %657 = vmatprep.subr.bf16.mxu0 %v426
    %658 = vmatpush1.bf16.msra.mxu0 %v425
    %659 = vmatprep.subr.bf16.mxu0 0
    %660 = vmatpush2.bf16.msra.mxu0 0
    %661 = vmatprep.subr.bf16.mxu0 0
    %662 = vmatpush2.bf16.msra.mxu0 0
    %663 = vmatprep.subr.bf16.mxu0 0
    %664 = vmatpush2.bf16.msra.mxu0 0
    %665 = vmatprep.subr.bf16.mxu0 0
    %666 = vmatpush2.bf16.msra.mxu0 0
    %667 = vmatprep.subr.bf16.mxu0 0
    %668 = vmatpush2.bf16.msra.mxu0 0
    %669 = vmatprep.subr.bf16.mxu0 0
    %670 = vmatpush2.bf16.msra.mxu0 0
    %671 = vmatprep.subr.bf16.mxu0 0
    %672 = vmatpush2.bf16.msra.mxu0 0
    %673 = vmatprep.subr.bf16.mxu0 0
    %674 = vmatpush2.bf16.msra.mxu0 0
    %675 = vmatprep.mubr.bf16.mxu0 0
    %676 = vmatmul.mubr.bf16.gmra.mxu0 %v601
    %v677 = vpop.f32.mrf.mxu0
    %v678 = vadd.f32 0.0, %v677
    %v679 = vpop.f32.mrf.mxu0
    %v680 = vadd.f32 0.0, %v679
    %v681 = vpop.f32.mrf.mxu0
    %v682 = vpop.f32.mrf.mxu0
    %683 = vdwg.mxu0
    %v684 = vadd.f32 %v185, %v637
    %v685 = vadd.f32 %v187, %v639
    %v686 = vadd.f32 %v258, %v678
    %v687 = vadd.f32 %v260, %v680
    %v688 = vxor.u32 %v684, 2147483648
    %v689 = vmul.f32 %v688, 1.442695
    %v690 = vpow.pop %v689
    %v691 = vadd.f32 %v690, 1.0
    %v692 = vrcp.pop %v691
    %v693 = vmul.f32 1.0, %v692
    %v694 = vxor.u32 %v685, 2147483648
    %v695 = vmul.f32 %v694, 1.442695
    %v696 = vpow.pop %v695
    %v697 = vadd.f32 %v696, 1.0
    %v698 = vrcp.pop %v697
    %v699 = vmul.f32 1.0, %v698
    %v700 = vtanh.pop %v686
    %v701 = vxor.u32 %v687, 2147483648
    %v702 = vmul.f32 %v701, 1.442695
    %v703 = vpow.pop %v702
    %v704 = vadd.f32 %v703, 1.0
    %v705 = vrcp.pop %v704
    %v706 = vmul.f32 1.0, %v705
    %v707 = vmul.f32 %v699, %v600
    %v708 = vmul.f32 %v693, %v700
    %v709 = vadd.f32 %v707, %v708
    %710 = vst [vmem:[#allocation3] sm:$0xff] %v709
    %v711 = vtanh.pop %v709
    %v712 = vmul.f32 %v706, %v711
    %713 = vst [vmem:[#allocation2] sm:$0xff] %v712
    %v714 = vld [vmem:[#allocation2] sm:$0xff]
    %v715 = vld [vmem:[#allocation3] sm:$0xff]
    %v716 = vpack.c.bf16 %v714, %v714
    %717 = vmatprep.subr.bf16.mxu0 %v452
    %718 = vmatpush1.bf16.msra.mxu0 %v451
    %719 = vmatprep.subr.bf16.mxu0 %v448
    %720 = vmatpush1.bf16.msra.mxu0 %v447
    %721 = vmatprep.subr.bf16.mxu0 %v444
    %722 = vmatpush1.bf16.msra.mxu0 %v443
    %723 = vmatprep.subr.bf16.mxu0 %v440
    %724 = vmatpush1.bf16.msra.mxu0 %v439
    %725 = vmatprep.subr.bf16.mxu0 %v436
    %726 = vmatpush1.bf16.msra.mxu0 %v435
    %727 = vmatprep.subr.bf16.mxu0 %v432
    %728 = vmatpush1.bf16.msra.mxu0 %v431
    %729 = vmatprep.subr.bf16.mxu0 %v428
    %730 = vmatpush1.bf16.msra.mxu0 %v427
    %731 = vmatprep.subr.bf16.mxu0 %v424
    %732 = vmatpush1.bf16.msra.mxu0 %v423
    %733 = vmatprep.subr.bf16.mxu0 0
    %734 = vmatpush2.bf16.msra.mxu0 0
    %735 = vmatprep.subr.bf16.mxu0 0
    %736 = vmatpush2.bf16.msra.mxu0 0
    %737 = vmatprep.subr.bf16.mxu0 0
    %738 = vmatpush2.bf16.msra.mxu0 0
    %739 = vmatprep.subr.bf16.mxu0 0
    %740 = vmatpush2.bf16.msra.mxu0 0
    %741 = vmatprep.subr.bf16.mxu0 0
    %742 = vmatpush2.bf16.msra.mxu0 0
    %743 = vmatprep.subr.bf16.mxu0 0
    %744 = vmatpush2.bf16.msra.mxu0 0
    %745 = vmatprep.subr.bf16.mxu0 0
    %746 = vmatpush2.bf16.msra.mxu0 0
    %747 = vmatprep.subr.bf16.mxu0 0
    %748 = vmatpush2.bf16.msra.mxu0 0
    %749 = vmatprep.mubr.bf16.mxu0 0
    %750 = vmatmul.mubr.bf16.gmra.mxu0 %v716
    %v751 = vpop.f32.mrf.mxu0
    %v752 = vadd.f32 0.0, %v751
    %v753 = vpop.f32.mrf.mxu0
    %v754 = vadd.f32 0.0, %v753
    %v755 = vpop.f32.mrf.mxu0
    %v756 = vpop.f32.mrf.mxu0
    %757 = vdwg.mxu0
    %758 = vmatprep.subr.bf16.mxu0 %v454
    %759 = vmatpush1.bf16.msra.mxu0 %v453
    %760 = vmatprep.subr.bf16.mxu0 %v450
    %761 = vmatpush1.bf16.msra.mxu0 %v449
    %762 = vmatprep.subr.bf16.mxu0 %v446
    %763 = vmatpush1.bf16.msra.mxu0 %v445
    %764 = vmatprep.subr.bf16.mxu0 %v442
    %765 = vmatpush1.bf16.msra.mxu0 %v441
    %766 = vmatprep.subr.bf16.mxu0 %v438
    %767 = vmatpush1.bf16.msra.mxu0 %v437
    %768 = vmatprep.subr.bf16.mxu0 %v434
    %769 = vmatpush1.bf16.msra.mxu0 %v433
    %770 = vmatprep.subr.bf16.mxu0 %v430
    %771 = vmatpush1.bf16.msra.mxu0 %v429
    %772 = vmatprep.subr.bf16.mxu0 %v426
    %773 = vmatpush1.bf16.msra.mxu0 %v425
    %774 = vmatprep.subr.bf16.mxu0 0
    %775 = vmatpush2.bf16.msra.mxu0 0
    %776 = vmatprep.subr.bf16.mxu0 0
    %777 = vmatpush2.bf16.msra.mxu0 0
    %778 = vmatprep.subr.bf16.mxu0 0
    %779 = vmatpush2.bf16.msra.mxu0 0
    %780 = vmatprep.subr.bf16.mxu0 0
    %781 = vmatpush2.bf16.msra.mxu0 0
    %782 = vmatprep.subr.bf16.mxu0 0
    %783 = vmatpush2.bf16.msra.mxu0 0
    %784 = vmatprep.subr.bf16.mxu0 0
    %785 = vmatpush2.bf16.msra.mxu0 0
    %786 = vmatprep.subr.bf16.mxu0 0
    %787 = vmatpush2.bf16.msra.mxu0 0
    %788 = vmatprep.subr.bf16.mxu0 0
    %789 = vmatpush2.bf16.msra.mxu0 0
    %790 = vmatprep.mubr.bf16.mxu0 0
    %791 = vmatmul.mubr.bf16.gmra.mxu0 %v716
    %v792 = vpop.f32.mrf.mxu0
    %v793 = vadd.f32 0.0, %v792
    %v794 = vpop.f32.mrf.mxu0
    %v795 = vadd.f32 0.0, %v794
    %v796 = vpop.f32.mrf.mxu0
    %v797 = vpop.f32.mrf.mxu0
    %798 = vdwg.mxu0
    %v799 = vadd.f32 %v191, %v752
    %v800 = vadd.f32 %v193, %v754
    %v801 = vadd.f32 %v264, %v793
    %v802 = vadd.f32 %v266, %v795
    %v803 = vxor.u32 %v799, 2147483648
    %v804 = vmul.f32 %v803, 1.442695
    %v805 = vpow.pop %v804
    %v806 = vadd.f32 %v805, 1.0
    %v807 = vrcp.pop %v806
    %v808 = vmul.f32 1.0, %v807
    %v809 = vxor.u32 %v800, 2147483648
    %v810 = vmul.f32 %v809, 1.442695
    %v811 = vpow.pop %v810
    %v812 = vadd.f32 %v811, 1.0
    %v813 = vrcp.pop %v812
    %v814 = vmul.f32 1.0, %v813
    %v815 = vtanh.pop %v801
    %v816 = vxor.u32 %v802, 2147483648
    %v817 = vmul.f32 %v816, 1.442695
    %v818 = vpow.pop %v817
    %v819 = vadd.f32 %v818, 1.0
    %v820 = vrcp.pop %v819
    %v821 = vmul.f32 1.0, %v820
    %v822 = vmul.f32 %v814, %v715
    %v823 = vmul.f32 %v808, %v815
    %v824 = vadd.f32 %v822, %v823
    %825 = vst [vmem:[#allocation3] sm:$0xff] %v824
    %v826 = vtanh.pop %v824
    %v827 = vmul.f32 %v821, %v826
    %828 = vst [vmem:[#allocation2] sm:$0xff] %v827
    %v829 = vld [vmem:[#allocation2] sm:$0xff]
    %v830 = vld [vmem:[#allocation3] sm:$0xff]
    %v831 = vpack.c.bf16 %v829, %v829
    %832 = vmatprep.subr.bf16.mxu0 %v452
    %833 = vmatpush1.bf16.msra.mxu0 %v451
    %834 = vmatprep.subr.bf16.mxu0 %v448
    %835 = vmatpush1.bf16.msra.mxu0 %v447
    %836 = vmatprep.subr.bf16.mxu0 %v444
    %837 = vmatpush1.bf16.msra.mxu0 %v443
    %838 = vmatprep.subr.bf16.mxu0 %v440
    %839 = vmatpush1.bf16.msra.mxu0 %v439
    %840 = vmatprep.subr.bf16.mxu0 %v436
    %841 = vmatpush1.bf16.msra.mxu0 %v435
    %842 = vmatprep.subr.bf16.mxu0 %v432
    %843 = vmatpush1.bf16.msra.mxu0 %v431
    %844 = vmatprep.subr.bf16.mxu0 %v428
    %845 = vmatpush1.bf16.msra.mxu0 %v427
    %846 = vmatprep.subr.bf16.mxu0 %v424
    %847 = vmatpush1.bf16.msra.mxu0 %v423
    %848 = vmatprep.subr.bf16.mxu0 0
    %849 = vmatpush2.bf16.msra.mxu0 0
    %850 = vmatprep.subr.bf16.mxu0 0
    %851 = vmatpush2.bf16.msra.mxu0 0
    %852 = vmatprep.subr.bf16.mxu0 0
    %853 = vmatpush2.bf16.msra.mxu0 0
    %854 = vmatprep.subr.bf16.mxu0 0
    %855 = vmatpush2.bf16.msra.mxu0 0
    %856 = vmatprep.subr.bf16.mxu0 0
    %857 = vmatpush2.bf16.msra.mxu0 0
    %858 = vmatprep.subr.bf16.mxu0 0
    %859 = vmatpush2.bf16.msra.mxu0 0
    %860 = vmatprep.subr.bf16.mxu0 0
    %861 = vmatpush2.bf16.msra.mxu0 0
    %862 = vmatprep.subr.bf16.mxu0 0
    %863 = vmatpush2.bf16.msra.mxu0 0
    %864 = vmatprep.mubr.bf16.mxu0 0
    %865 = vmatmul.mubr.bf16.gmra.mxu0 %v831
    %v866 = vpop.f32.mrf.mxu0
    %v867 = vadd.f32 0.0, %v866
    %v868 = vpop.f32.mrf.mxu0
    %v869 = vadd.f32 0.0, %v868
    %v870 = vpop.f32.mrf.mxu0
    %v871 = vpop.f32.mrf.mxu0
    %872 = vdwg.mxu0
    %873 = vmatprep.subr.bf16.mxu0 %v454
    %874 = vmatpush1.bf16.msra.mxu0 %v453
    %875 = vmatprep.subr.bf16.mxu0 %v450
    %876 = vmatpush1.bf16.msra.mxu0 %v449
    %877 = vmatprep.subr.bf16.mxu0 %v446
    %878 = vmatpush1.bf16.msra.mxu0 %v445
    %879 = vmatprep.subr.bf16.mxu0 %v442
    %880 = vmatpush1.bf16.msra.mxu0 %v441
    %881 = vmatprep.subr.bf16.mxu0 %v438
    %882 = vmatpush1.bf16.msra.mxu0 %v437
    %883 = vmatprep.subr.bf16.mxu0 %v434
    %884 = vmatpush1.bf16.msra.mxu0 %v433
    %885 = vmatprep.subr.bf16.mxu0 %v430
    %886 = vmatpush1.bf16.msra.mxu0 %v429
    %887 = vmatprep.subr.bf16.mxu0 %v426
    %888 = vmatpush1.bf16.msra.mxu0 %v425
    %889 = vmatprep.subr.bf16.mxu0 0
    %890 = vmatpush2.bf16.msra.mxu0 0
    %891 = vmatprep.subr.bf16.mxu0 0
    %892 = vmatpush2.bf16.msra.mxu0 0
    %893 = vmatprep.subr.bf16.mxu0 0
    %894 = vmatpush2.bf16.msra.mxu0 0
    %895 = vmatprep.subr.bf16.mxu0 0
    %896 = vmatpush2.bf16.msra.mxu0 0
    %897 = vmatprep.subr.bf16.mxu0 0
    %898 = vmatpush2.bf16.msra.mxu0 0
    %899 = vmatprep.subr.bf16.mxu0 0
    %900 = vmatpush2.bf16.msra.mxu0 0
    %901 = vmatprep.subr.bf16.mxu0 0
    %902 = vmatpush2.bf16.msra.mxu0 0
    %903 = vmatprep.subr.bf16.mxu0 0
    %904 = vmatpush2.bf16.msra.mxu0 0
    %905 = vmatprep.mubr.bf16.mxu0 0
    %906 = vmatmul.mubr.bf16.gmra.mxu0 %v831
    %v907 = vpop.f32.mrf.mxu0
    %v908 = vadd.f32 0.0, %v907
    %v909 = vpop.f32.mrf.mxu0
    %v910 = vadd.f32 0.0, %v909
    %v911 = vpop.f32.mrf.mxu0
    %v912 = vpop.f32.mrf.mxu0
    %913 = vdwg.mxu0
    %v914 = vadd.f32 %v195, %v867
    %v915 = vadd.f32 %v197, %v869
    %v916 = vadd.f32 %v268, %v908
    %v917 = vadd.f32 %v270, %v910
    %v918 = vxor.u32 %v914, 2147483648
    %v919 = vmul.f32 %v918, 1.442695
    %v920 = vpow.pop %v919
    %v921 = vadd.f32 %v920, 1.0
    %v922 = vrcp.pop %v921
    %v923 = vmul.f32 1.0, %v922
    %v924 = vxor.u32 %v915, 2147483648
    %v925 = vmul.f32 %v924, 1.442695
    %v926 = vpow.pop %v925
    %v927 = vadd.f32 %v926, 1.0
    %v928 = vrcp.pop %v927
    %v929 = vmul.f32 1.0, %v928
    %v930 = vtanh.pop %v916
    %v931 = vxor.u32 %v917, 2147483648
    %v932 = vmul.f32 %v931, 1.442695
    %v933 = vpow.pop %v932
    %v934 = vadd.f32 %v933, 1.0
    %v935 = vrcp.pop %v934
    %v936 = vmul.f32 1.0, %v935
    %v937 = vmul.f32 %v929, %v830
    %v938 = vmul.f32 %v923, %v930
    %v939 = vadd.f32 %v937, %v938
    %940 = vst [vmem:[#allocation3] sm:$0xff] %v939
    %v941 = vtanh.pop %v939
    %v942 = vmul.f32 %v936, %v941
    %943 = vst [vmem:[#allocation2] sm:$0xff] %v942
    %v944 = vld [vmem:[#allocation2] sm:$0xff]
    %v945 = vld [vmem:[#allocation3] sm:$0xff]
    %v946 = vpack.c.bf16 %v944, %v944
    %947 = vmatprep.subr.bf16.mxu0 %v452
    %948 = vmatpush1.bf16.msra.mxu0 %v451
    %949 = vmatprep.subr.bf16.mxu0 %v448
    %950 = vmatpush1.bf16.msra.mxu0 %v447
    %951 = vmatprep.subr.bf16.mxu0 %v444
    %952 = vmatpush1.bf16.msra.mxu0 %v443
    %953 = vmatprep.subr.bf16.mxu0 %v440
    %954 = vmatpush1.bf16.msra.mxu0 %v439
    %955 = vmatprep.subr.bf16.mxu0 %v436
    %956 = vmatpush1.bf16.msra.mxu0 %v435
    %957 = vmatprep.subr.bf16.mxu0 %v432
    %958 = vmatpush1.bf16.msra.mxu0 %v431
    %959 = vmatprep.subr.bf16.mxu0 %v428
    %960 = vmatpush1.bf16.msra.mxu0 %v427
    %961 = vmatprep.subr.bf16.mxu0 %v424
    %962 = vmatpush1.bf16.msra.mxu0 %v423
    %963 = vmatprep.subr.bf16.mxu0 0
    %964 = vmatpush2.bf16.msra.mxu0 0
    %965 = vmatprep.subr.bf16.mxu0 0
    %966 = vmatpush2.bf16.msra.mxu0 0
    %967 = vmatprep.subr.bf16.mxu0 0
    %968 = vmatpush2.bf16.msra.mxu0 0
    %969 = vmatprep.subr.bf16.mxu0 0
    %970 = vmatpush2.bf16.msra.mxu0 0
    %971 = vmatprep.subr.bf16.mxu0 0
    %972 = vmatpush2.bf16.msra.mxu0 0
    %973 = vmatprep.subr.bf16.mxu0 0
    %974 = vmatpush2.bf16.msra.mxu0 0
    %975 = vmatprep.subr.bf16.mxu0 0
    %976 = vmatpush2.bf16.msra.mxu0 0
    %977 = vmatprep.subr.bf16.mxu0 0
    %978 = vmatpush2.bf16.msra.mxu0 0
    %979 = vmatprep.mubr.bf16.mxu0 0
    %980 = vmatmul.mubr.bf16.gmra.mxu0 %v946
    %v981 = vpop.f32.mrf.mxu0
    %v982 = vadd.f32 0.0, %v981
    %v983 = vpop.f32.mrf.mxu0
    %v984 = vadd.f32 0.0, %v983
    %v985 = vpop.f32.mrf.mxu0
    %v986 = vpop.f32.mrf.mxu0
    %987 = vdwg.mxu0
    %988 = vmatprep.subr.bf16.mxu0 %v454
    %989 = vmatpush1.bf16.msra.mxu0 %v453
    %990 = vmatprep.subr.bf16.mxu0 %v450
    %991 = vmatpush1.bf16.msra.mxu0 %v449
    %992 = vmatprep.subr.bf16.mxu0 %v446
    %993 = vmatpush1.bf16.msra.mxu0 %v445
    %994 = vmatprep.subr.bf16.mxu0 %v442
    %995 = vmatpush1.bf16.msra.mxu0 %v441
    %996 = vmatprep.subr.bf16.mxu0 %v438
    %997 = vmatpush1.bf16.msra.mxu0 %v437
    %998 = vmatprep.subr.bf16.mxu0 %v434
    %999 = vmatpush1.bf16.msra.mxu0 %v433
    %1000 = vmatprep.subr.bf16.mxu0 %v430
    %1001 = vmatpush1.bf16.msra.mxu0 %v429
    %1002 = vmatprep.subr.bf16.mxu0 %v426
    %1003 = vmatpush1.bf16.msra.mxu0 %v425
    %1004 = vmatprep.subr.bf16.mxu0 0
    %1005 = vmatpush2.bf16.msra.mxu0 0
    %1006 = vmatprep.subr.bf16.mxu0 0
    %1007 = vmatpush2.bf16.msra.mxu0 0
    %1008 = vmatprep.subr.bf16.mxu0 0
    %1009 = vmatpush2.bf16.msra.mxu0 0
    %1010 = vmatprep.subr.bf16.mxu0 0
    %1011 = vmatpush2.bf16.msra.mxu0 0
    %1012 = vmatprep.subr.bf16.mxu0 0
    %1013 = vmatpush2.bf16.msra.mxu0 0
    %1014 = vmatprep.subr.bf16.mxu0 0
    %1015 = vmatpush2.bf16.msra.mxu0 0
    %1016 = vmatprep.subr.bf16.mxu0 0
    %1017 = vmatpush2.bf16.msra.mxu0 0
    %1018 = vmatprep.subr.bf16.mxu0 0
    %1019 = vmatpush2.bf16.msra.mxu0 0
    %1020 = vmatprep.mubr.bf16.mxu0 0
    %1021 = vmatmul.mubr.bf16.gmra.mxu0 %v946
    %v1022 = vpop.f32.mrf.mxu0
    %v1023 = vadd.f32 0.0, %v1022
    %v1024 = vpop.f32.mrf.mxu0
    %v1025 = vadd.f32 0.0, %v1024
    %v1026 = vpop.f32.mrf.mxu0
    %v1027 = vpop.f32.mrf.mxu0
    %1028 = vdwg.mxu0
    %v1029 = vadd.f32 %v201, %v982
    %v1030 = vadd.f32 %v203, %v984
    %v1031 = vadd.f32 %v274, %v1023
    %v1032 = vadd.f32 %v276, %v1025
    %v1033 = vxor.u32 %v1029, 2147483648
    %v1034 = vmul.f32 %v1033, 1.442695
    %v1035 = vpow.pop %v1034
    %v1036 = vadd.f32 %v1035, 1.0
    %v1037 = vrcp.pop %v1036
    %v1038 = vmul.f32 1.0, %v1037
    %v1039 = vxor.u32 %v1030, 2147483648
    %v1040 = vmul.f32 %v1039, 1.442695
    %v1041 = vpow.pop %v1040
    %v1042 = vadd.f32 %v1041, 1.0
    %v1043 = vrcp.pop %v1042
    %v1044 = vmul.f32 1.0, %v1043
    %v1045 = vtanh.pop %v1031
    %v1046 = vxor.u32 %v1032, 2147483648
    %v1047 = vmul.f32 %v1046, 1.442695
    %v1048 = vpow.pop %v1047
    %v1049 = vadd.f32 %v1048, 1.0
    %v1050 = vrcp.pop %v1049
    %v1051 = vmul.f32 1.0, %v1050
    %v1052 = vmul.f32 %v1044, %v945
    %v1053 = vmul.f32 %v1038, %v1045
    %v1054 = vadd.f32 %v1052, %v1053
    %1055 = vst [vmem:[#allocation3] sm:$0xff] %v1054
    %v1056 = vtanh.pop %v1054
    %v1057 = vmul.f32 %v1051, %v1056
    %1058 = vst [vmem:[#allocation2] sm:$0xff] %v1057
    %v1059 = vld [vmem:[#allocation2] sm:$0xff]
    %v1060 = vld [vmem:[#allocation3] sm:$0xff]
    %v1061 = vpack.c.bf16 %v1059, %v1059
    %1062 = vmatprep.subr.bf16.mxu0 %v452
    %1063 = vmatpush1.bf16.msra.mxu0 %v451
    %1064 = vmatprep.subr.bf16.mxu0 %v448
    %1065 = vmatpush1.bf16.msra.mxu0 %v447
    %1066 = vmatprep.subr.bf16.mxu0 %v444
    %1067 = vmatpush1.bf16.msra.mxu0 %v443
    %1068 = vmatprep.subr.bf16.mxu0 %v440
    %1069 = vmatpush1.bf16.msra.mxu0 %v439
    %1070 = vmatprep.subr.bf16.mxu0 %v436
    %1071 = vmatpush1.bf16.msra.mxu0 %v435
    %1072 = vmatprep.subr.bf16.mxu0 %v432
    %1073 = vmatpush1.bf16.msra.mxu0 %v431
    %1074 = vmatprep.subr.bf16.mxu0 %v428
    %1075 = vmatpush1.bf16.msra.mxu0 %v427
    %1076 = vmatprep.subr.bf16.mxu0 %v424
    %1077 = vmatpush1.bf16.msra.mxu0 %v423
    %1078 = vmatprep.subr.bf16.mxu0 0
    %1079 = vmatpush2.bf16.msra.mxu0 0
    %1080 = vmatprep.subr.bf16.mxu0 0
    %1081 = vmatpush2.bf16.msra.mxu0 0
    %1082 = vmatprep.subr.bf16.mxu0 0
    %1083 = vmatpush2.bf16.msra.mxu0 0
    %1084 = vmatprep.subr.bf16.mxu0 0
    %1085 = vmatpush2.bf16.msra.mxu0 0
    %1086 = vmatprep.subr.bf16.mxu0 0
    %1087 = vmatpush2.bf16.msra.mxu0 0
    %1088 = vmatprep.subr.bf16.mxu0 0
    %1089 = vmatpush2.bf16.msra.mxu0 0
    %1090 = vmatprep.subr.bf16.mxu0 0
    %1091 = vmatpush2.bf16.msra.mxu0 0
    %1092 = vmatprep.subr.bf16.mxu0 0
    %1093 = vmatpush2.bf16.msra.mxu0 0
    %1094 = vmatprep.mubr.bf16.mxu0 0
    %1095 = vmatmul.mubr.bf16.gmra.mxu0 %v1061
    %v1096 = vpop.f32.mrf.mxu0
    %v1097 = vadd.f32 0.0, %v1096
    %v1098 = vpop.f32.mrf.mxu0
    %v1099 = vadd.f32 0.0, %v1098
    %v1100 = vpop.f32.mrf.mxu0
    %v1101 = vpop.f32.mrf.mxu0
    %1102 = vdwg.mxu0
    %1103 = vmatprep.subr.bf16.mxu0 %v454
    %1104 = vmatpush1.bf16.msra.mxu0 %v453
    %1105 = vmatprep.subr.bf16.mxu0 %v450
    %1106 = vmatpush1.bf16.msra.mxu0 %v449
    %1107 = vmatprep.subr.bf16.mxu0 %v446
    %1108 = vmatpush1.bf16.msra.mxu0 %v445
    %1109 = vmatprep.subr.bf16.mxu0 %v442
    %1110 = vmatpush1.bf16.msra.mxu0 %v441
    %1111 = vmatprep.subr.bf16.mxu0 %v438
    %1112 = vmatpush1.bf16.msra.mxu0 %v437
    %1113 = vmatprep.subr.bf16.mxu0 %v434
    %1114 = vmatpush1.bf16.msra.mxu0 %v433
    %1115 = vmatprep.subr.bf16.mxu0 %v430
    %1116 = vmatpush1.bf16.msra.mxu0 %v429
    %1117 = vmatprep.subr.bf16.mxu0 %v426
    %1118 = vmatpush1.bf16.msra.mxu0 %v425
    %1119 = vmatprep.subr.bf16.mxu0 0
    %1120 = vmatpush2.bf16.msra.mxu0 0
    %1121 = vmatprep.subr.bf16.mxu0 0
    %1122 = vmatpush2.bf16.msra.mxu0 0
    %1123 = vmatprep.subr.bf16.mxu0 0
    %1124 = vmatpush2.bf16.msra.mxu0 0
    %1125 = vmatprep.subr.bf16.mxu0 0
    %1126 = vmatpush2.bf16.msra.mxu0 0
    %1127 = vmatprep.subr.bf16.mxu0 0
    %1128 = vmatpush2.bf16.msra.mxu0 0
    %1129 = vmatprep.subr.bf16.mxu0 0
    %1130 = vmatpush2.bf16.msra.mxu0 0
    %1131 = vmatprep.subr.bf16.mxu0 0
    %1132 = vmatpush2.bf16.msra.mxu0 0
    %1133 = vmatprep.subr.bf16.mxu0 0
    %1134 = vmatpush2.bf16.msra.mxu0 0
    %1135 = vmatprep.mubr.bf16.mxu0 0
    %1136 = vmatmul.mubr.bf16.gmra.mxu0 %v1061
    %v1137 = vpop.f32.mrf.mxu0
    %v1138 = vadd.f32 0.0, %v1137
    %v1139 = vpop.f32.mrf.mxu0
    %v1140 = vadd.f32 0.0, %v1139
    %v1141 = vpop.f32.mrf.mxu0
    %v1142 = vpop.f32.mrf.mxu0
    %1143 = vdwg.mxu0
    %v1144 = vadd.f32 %v205, %v1097
    %v1145 = vadd.f32 %v207, %v1099
    %v1146 = vadd.f32 %v278, %v1138
    %v1147 = vadd.f32 %v280, %v1140
    %v1148 = vxor.u32 %v1144, 2147483648
    %v1149 = vmul.f32 %v1148, 1.442695
    %v1150 = vpow.pop %v1149
    %v1151 = vadd.f32 %v1150, 1.0
    %v1152 = vrcp.pop %v1151
    %v1153 = vmul.f32 1.0, %v1152
    %v1154 = vxor.u32 %v1145, 2147483648
    %v1155 = vmul.f32 %v1154, 1.442695
    %v1156 = vpow.pop %v1155
    %v1157 = vadd.f32 %v1156, 1.0
    %v1158 = vrcp.pop %v1157
    %v1159 = vmul.f32 1.0, %v1158
    %v1160 = vtanh.pop %v1146
    %v1161 = vxor.u32 %v1147, 2147483648
    %v1162 = vmul.f32 %v1161, 1.442695
    %v1163 = vpow.pop %v1162
    %v1164 = vadd.f32 %v1163, 1.0
    %v1165 = vrcp.pop %v1164
    %v1166 = vmul.f32 1.0, %v1165
    %v1167 = vmul.f32 %v1159, %v1060
    %v1168 = vmul.f32 %v1153, %v1160
    %v1169 = vadd.f32 %v1167, %v1168
    %1170 = vst [vmem:[#allocation3] sm:$0xff] %v1169
    %v1171 = vtanh.pop %v1169
    %v1172 = vmul.f32 %v1166, %v1171
    %1173 = vst [vmem:[#allocation2] sm:$0xff] %v1172
    %v1174 = vld [vmem:[#allocation2] sm:$0xff]
    %v1175 = vld [vmem:[#allocation3] sm:$0xff]
    %v1176 = vpack.c.bf16 %v1174, %v1174
    %1177 = vmatprep.subr.bf16.mxu0 %v452
    %1178 = vmatpush1.bf16.msra.mxu0 %v451
    %1179 = vmatprep.subr.bf16.mxu0 %v448
    %1180 = vmatpush1.bf16.msra.mxu0 %v447
    %1181 = vmatprep.subr.bf16.mxu0 %v444
    %1182 = vmatpush1.bf16.msra.mxu0 %v443
    %1183 = vmatprep.subr.bf16.mxu0 %v440
    %1184 = vmatpush1.bf16.msra.mxu0 %v439
    %1185 = vmatprep.subr.bf16.mxu0 %v436
    %1186 = vmatpush1.bf16.msra.mxu0 %v435
    %1187 = vmatprep.subr.bf16.mxu0 %v432
    %1188 = vmatpush1.bf16.msra.mxu0 %v431
    %1189 = vmatprep.subr.bf16.mxu0 %v428
    %1190 = vmatpush1.bf16.msra.mxu0 %v427
    %1191 = vmatprep.subr.bf16.mxu0 %v424
    %1192 = vmatpush1.bf16.msra.mxu0 %v423
    %1193 = vmatprep.subr.bf16.mxu0 0
    %1194 = vmatpush2.bf16.msra.mxu0 0
    %1195 = vmatprep.subr.bf16.mxu0 0
    %1196 = vmatpush2.bf16.msra.mxu0 0
    %1197 = vmatprep.subr.bf16.mxu0 0
    %1198 = vmatpush2.bf16.msra.mxu0 0
    %1199 = vmatprep.subr.bf16.mxu0 0
    %1200 = vmatpush2.bf16.msra.mxu0 0
    %1201 = vmatprep.subr.bf16.mxu0 0
    %1202 = vmatpush2.bf16.msra.mxu0 0
    %1203 = vmatprep.subr.bf16.mxu0 0
    %1204 = vmatpush2.bf16.msra.mxu0 0
    %1205 = vmatprep.subr.bf16.mxu0 0
    %1206 = vmatpush2.bf16.msra.mxu0 0
    %1207 = vmatprep.subr.bf16.mxu0 0
    %1208 = vmatpush2.bf16.msra.mxu0 0
    %1209 = vmatprep.mubr.bf16.mxu0 0
    %1210 = vmatmul.mubr.bf16.gmra.mxu0 %v1176
    %v1211 = vpop.f32.mrf.mxu0
    %v1212 = vadd.f32 0.0, %v1211
    %v1213 = vpop.f32.mrf.mxu0
    %v1214 = vadd.f32 0.0, %v1213
    %v1215 = vpop.f32.mrf.mxu0
    %v1216 = vpop.f32.mrf.mxu0
    %1217 = vdwg.mxu0
    %1218 = vmatprep.subr.bf16.mxu0 %v454
    %1219 = vmatpush1.bf16.msra.mxu0 %v453
    %1220 = vmatprep.subr.bf16.mxu0 %v450
    %1221 = vmatpush1.bf16.msra.mxu0 %v449
    %1222 = vmatprep.subr.bf16.mxu0 %v446
    %1223 = vmatpush1.bf16.msra.mxu0 %v445
    %1224 = vmatprep.subr.bf16.mxu0 %v442
    %1225 = vmatpush1.bf16.msra.mxu0 %v441
    %1226 = vmatprep.subr.bf16.mxu0 %v438
    %1227 = vmatpush1.bf16.msra.mxu0 %v437
    %1228 = vmatprep.subr.bf16.mxu0 %v434
    %1229 = vmatpush1.bf16.msra.mxu0 %v433
    %1230 = vmatprep.subr.bf16.mxu0 %v430
    %1231 = vmatpush1.bf16.msra.mxu0 %v429
    %1232 = vmatprep.subr.bf16.mxu0 %v426
    %1233 = vmatpush1.bf16.msra.mxu0 %v425
    %1234 = vmatprep.subr.bf16.mxu0 0
    %1235 = vmatpush2.bf16.msra.mxu0 0
    %1236 = vmatprep.subr.bf16.mxu0 0
    %1237 = vmatpush2.bf16.msra.mxu0 0
    %1238 = vmatprep.subr.bf16.mxu0 0
    %1239 = vmatpush2.bf16.msra.mxu0 0
    %1240 = vmatprep.subr.bf16.mxu0 0
    %1241 = vmatpush2.bf16.msra.mxu0 0
    %1242 = vmatprep.subr.bf16.mxu0 0
    %1243 = vmatpush2.bf16.msra.mxu0 0
    %1244 = vmatprep.subr.bf16.mxu0 0
    %1245 = vmatpush2.bf16.msra.mxu0 0
    %1246 = vmatprep.subr.bf16.mxu0 0
    %1247 = vmatpush2.bf16.msra.mxu0 0
    %1248 = vmatprep.subr.bf16.mxu0 0
    %1249 = vmatpush2.bf16.msra.mxu0 0
    %1250 = vmatprep.mubr.bf16.mxu0 0
    %1251 = vmatmul.mubr.bf16.gmra.mxu0 %v1176
    %v1252 = vpop.f32.mrf.mxu0
    %v1253 = vadd.f32 0.0, %v1252
    %v1254 = vpop.f32.mrf.mxu0
    %v1255 = vadd.f32 0.0, %v1254
    %v1256 = vpop.f32.mrf.mxu0
    %v1257 = vpop.f32.mrf.mxu0
    %1258 = vdwg.mxu0
    %v1259 = vadd.f32 %v211, %v1212
    %v1260 = vadd.f32 %v213, %v1214
    %v1261 = vadd.f32 %v284, %v1253
    %v1262 = vadd.f32 %v286, %v1255
    %v1263 = vxor.u32 %v1259, 2147483648
    %v1264 = vmul.f32 %v1263, 1.442695
    %v1265 = vpow.pop %v1264
    %v1266 = vadd.f32 %v1265, 1.0
    %v1267 = vrcp.pop %v1266
    %v1268 = vmul.f32 1.0, %v1267
    %v1269 = vxor.u32 %v1260, 2147483648
    %v1270 = vmul.f32 %v1269, 1.442695
    %v1271 = vpow.pop %v1270
    %v1272 = vadd.f32 %v1271, 1.0
    %v1273 = vrcp.pop %v1272
    %v1274 = vmul.f32 1.0, %v1273
    %v1275 = vtanh.pop %v1261
    %v1276 = vxor.u32 %v1262, 2147483648
    %v1277 = vmul.f32 %v1276, 1.442695
    %v1278 = vpow.pop %v1277
    %v1279 = vadd.f32 %v1278, 1.0
    %v1280 = vrcp.pop %v1279
    %v1281 = vmul.f32 1.0, %v1280
    %v1282 = vmul.f32 %v1274, %v1175
    %v1283 = vmul.f32 %v1268, %v1275
    %v1284 = vadd.f32 %v1282, %v1283
    %1285 = vst [vmem:[#allocation3] sm:$0xff] %v1284
    %v1286 = vtanh.pop %v1284
    %v1287 = vmul.f32 %v1281, %v1286
    %1288 = vst [vmem:[#allocation2] sm:$0xff] %v1287
    %v1289 = vld [vmem:[#allocation2] sm:$0xff]
    %v1290 = vld [vmem:[#allocation3] sm:$0xff]
    %v1291 = vpack.c.bf16 %v1289, %v1289
    %1292 = vmatprep.subr.bf16.mxu0 %v452
    %1293 = vmatpush1.bf16.msra.mxu0 %v451
    %1294 = vmatprep.subr.bf16.mxu0 %v448
    %1295 = vmatpush1.bf16.msra.mxu0 %v447
    %1296 = vmatprep.subr.bf16.mxu0 %v444
    %1297 = vmatpush1.bf16.msra.mxu0 %v443
    %1298 = vmatprep.subr.bf16.mxu0 %v440
    %1299 = vmatpush1.bf16.msra.mxu0 %v439
    %1300 = vmatprep.subr.bf16.mxu0 %v436
    %1301 = vmatpush1.bf16.msra.mxu0 %v435
    %1302 = vmatprep.subr.bf16.mxu0 %v432
    %1303 = vmatpush1.bf16.msra.mxu0 %v431
    %1304 = vmatprep.subr.bf16.mxu0 %v428
    %1305 = vmatpush1.bf16.msra.mxu0 %v427
    %1306 = vmatprep.subr.bf16.mxu0 %v424
    %1307 = vmatpush1.bf16.msra.mxu0 %v423
    %1308 = vmatprep.subr.bf16.mxu0 0
    %1309 = vmatpush2.bf16.msra.mxu0 0
    %1310 = vmatprep.subr.bf16.mxu0 0
    %1311 = vmatpush2.bf16.msra.mxu0 0
    %1312 = vmatprep.subr.bf16.mxu0 0
    %1313 = vmatpush2.bf16.msra.mxu0 0
    %1314 = vmatprep.subr.bf16.mxu0 0
    %1315 = vmatpush2.bf16.msra.mxu0 0
    %1316 = vmatprep.subr.bf16.mxu0 0
    %1317 = vmatpush2.bf16.msra.mxu0 0
    %1318 = vmatprep.subr.bf16.mxu0 0
    %1319 = vmatpush2.bf16.msra.mxu0 0
    %1320 = vmatprep.subr.bf16.mxu0 0
    %1321 = vmatpush2.bf16.msra.mxu0 0
    %1322 = vmatprep.subr.bf16.mxu0 0
    %1323 = vmatpush2.bf16.msra.mxu0 0
    %1324 = vmatprep.mubr.bf16.mxu0 0
    %1325 = vmatmul.mubr.bf16.gmra.mxu0 %v1291
    %v1326 = vpop.f32.mrf.mxu0
    %v1327 = vadd.f32 0.0, %v1326
    %v1328 = vpop.f32.mrf.mxu0
    %v1329 = vadd.f32 0.0, %v1328
    %v1330 = vpop.f32.mrf.mxu0
    %v1331 = vpop.f32.mrf.mxu0
    %1332 = vdwg.mxu0
    %1333 = vmatprep.subr.bf16.mxu0 %v454
    %1334 = vmatpush1.bf16.msra.mxu0 %v453
    %1335 = vmatprep.subr.bf16.mxu0 %v450
    %1336 = vmatpush1.bf16.msra.mxu0 %v449
    %1337 = vmatprep.subr.bf16.mxu0 %v446
    %1338 = vmatpush1.bf16.msra.mxu0 %v445
    %1339 = vmatprep.subr.bf16.mxu0 %v442
    %1340 = vmatpush1.bf16.msra.mxu0 %v441
    %1341 = vmatprep.subr.bf16.mxu0 %v438
    %1342 = vmatpush1.bf16.msra.mxu0 %v437
    %1343 = vmatprep.subr.bf16.mxu0 %v434
    %1344 = vmatpush1.bf16.msra.mxu0 %v433
    %1345 = vmatprep.subr.bf16.mxu0 %v430
    %1346 = vmatpush1.bf16.msra.mxu0 %v429
    %1347 = vmatprep.subr.bf16.mxu0 %v426
    %1348 = vmatpush1.bf16.msra.mxu0 %v425
    %1349 = vmatprep.subr.bf16.mxu0 0
    %1350 = vmatpush2.bf16.msra.mxu0 0
    %1351 = vmatprep.subr.bf16.mxu0 0
    %1352 = vmatpush2.bf16.msra.mxu0 0
    %1353 = vmatprep.subr.bf16.mxu0 0
    %1354 = vmatpush2.bf16.msra.mxu0 0
    %1355 = vmatprep.subr.bf16.mxu0 0
    %1356 = vmatpush2.bf16.msra.mxu0 0
    %1357 = vmatprep.subr.bf16.mxu0 0
    %1358 = vmatpush2.bf16.msra.mxu0 0
    %1359 = vmatprep.subr.bf16.mxu0 0
    %1360 = vmatpush2.bf16.msra.mxu0 0
    %1361 = vmatprep.subr.bf16.mxu0 0
    %1362 = vmatpush2.bf16.msra.mxu0 0
    %1363 = vmatprep.subr.bf16.mxu0 0
    %1364 = vmatpush2.bf16.msra.mxu0 0
    %1365 = vmatprep.mubr.bf16.mxu0 0
    %1366 = vmatmul.mubr.bf16.gmra.mxu0 %v1291
    %v1367 = vpop.f32.mrf.mxu0
    %v1368 = vadd.f32 0.0, %v1367
    %v1369 = vpop.f32.mrf.mxu0
    %v1370 = vadd.f32 0.0, %v1369
    %v1371 = vpop.f32.mrf.mxu0
    %v1372 = vpop.f32.mrf.mxu0
    %1373 = vdwg.mxu0
    %v1374 = vadd.f32 %v215, %v1327
    %v1375 = vadd.f32 %v217, %v1329
    %v1376 = vadd.f32 %v288, %v1368
    %v1377 = vadd.f32 %v290, %v1370
    %v1378 = vxor.u32 %v1374, 2147483648
    %v1379 = vmul.f32 %v1378, 1.442695
    %v1380 = vpow.pop %v1379
    %v1381 = vadd.f32 %v1380, 1.0
    %v1382 = vrcp.pop %v1381
    %v1383 = vmul.f32 1.0, %v1382
    %v1384 = vxor.u32 %v1375, 2147483648
    %v1385 = vmul.f32 %v1384, 1.442695
    %v1386 = vpow.pop %v1385
    %v1387 = vadd.f32 %v1386, 1.0
    %v1388 = vrcp.pop %v1387
    %v1389 = vmul.f32 1.0, %v1388
    %v1390 = vtanh.pop %v1376
    %v1391 = vxor.u32 %v1377, 2147483648
    %v1392 = vmul.f32 %v1391, 1.442695
    %v1393 = vpow.pop %v1392
    %v1394 = vadd.f32 %v1393, 1.0
    %v1395 = vrcp.pop %v1394
    %v1396 = vmul.f32 1.0, %v1395
    %v1397 = vmul.f32 %v1389, %v1290
    %v1398 = vmul.f32 %v1383, %v1390
    %v1399 = vadd.f32 %v1397, %v1398
    %1400 = vst [vmem:[#allocation3] sm:$0xff] %v1399
    %v1401 = vtanh.pop %v1399
    %v1402 = vmul.f32 %v1396, %v1401
    %1403 = vst [vmem:[#allocation2] sm:$0xff] %v1402
    // Predicated region
    $region38: #{tpu_custom_call.1} parent=1 // pred_check
      %p1404 = pneg %p53
    $region39: #{tpu_custom_call.1} parent=1 // pred_check_branch
      %1406 = sbr.rel (%p1404) target = $region41
    $region40: #{tpu_custom_call.1} parent=1 // pred_region
      %v1407 = vld [vmem:[#allocation2] sm:$0xff]
      %v1408 = vld [vmem:[#allocation7] sm:$0xff]
      %v1409 = vld [vmem:[#allocation7 + $0x8] sm:$0xff]
      %v1410 = vld [vmem:[#allocation7 + $0x10] sm:$0xff]
      %v1411 = vld [vmem:[#allocation7 + $0x18] sm:$0xff]
      %v1412 = vld [vmem:[#allocation7 + $0x20] sm:$0xff]
      %v1413 = vld [vmem:[#allocation7 + $0x28] sm:$0xff]
      %v1414 = vld [vmem:[#allocation7 + $0x30] sm:$0xff]
      %v1415 = vld [vmem:[#allocation7 + $0x38] sm:$0xff]
      %v1416 = vld [vmem:[#allocation7 + $0x40] sm:$0xff]
      %v1417 = vld [vmem:[#allocation7 + $0x48] sm:$0xff]
      %v1418 = vld [vmem:[#allocation7 + $0x50] sm:$0xff]
      %v1419 = vld [vmem:[#allocation7 + $0x58] sm:$0xff]
      %v1420 = vld [vmem:[#allocation7 + $0x60] sm:$0xff]
      %v1421 = vld [vmem:[#allocation7 + $0x68] sm:$0xff]
      %v1422 = vld [vmem:[#allocation7 + $0x70] sm:$0xff]
      %v1423 = vld [vmem:[#allocation7 + $0x78] sm:$0xff]
      %v1424 = vld [vmem:[%s5] sm:$0x1]
      %v1426 = vlaneseq
      %v1427 = vshrl.u32 %v1426, 7
      %v1428 = vsub.s32 0, %v1427
      %v1429 = vrot.slane %v1424, %v1428
      %1431 = vmatprep.subr.mxu0 0.0
      %1432 = vmatpush1.msra.mxu0 %v1423
      %1433 = vmatprep.subr.mxu0 0.0
      %1434 = vmatpush1.msra.mxu0 %v1422
      %1435 = vmatprep.subr.mxu0 0.0
      %1436 = vmatpush1.msra.mxu0 %v1421
      %1437 = vmatprep.subr.mxu0 0.0
      %1438 = vmatpush1.msra.mxu0 %v1420
      %1439 = vmatprep.subr.mxu0 0.0
      %1440 = vmatpush1.msra.mxu0 %v1419
      %1441 = vmatprep.subr.mxu0 0.0
      %1442 = vmatpush1.msra.mxu0 %v1418
      %1443 = vmatprep.subr.mxu0 0.0
      %1444 = vmatpush1.msra.mxu0 %v1417
      %1445 = vmatprep.subr.mxu0 0.0
      %1446 = vmatpush1.msra.mxu0 %v1416
      %1447 = vmatprep.subr.mxu0 0.0
      %1448 = vmatpush1.msra.mxu0 %v1415
      %1449 = vmatprep.subr.mxu0 0.0
      %1450 = vmatpush1.msra.mxu0 %v1414
      %1451 = vmatprep.subr.mxu0 0.0
      %1452 = vmatpush1.msra.mxu0 %v1413
      %1453 = vmatprep.subr.mxu0 0.0
      %1454 = vmatpush1.msra.mxu0 %v1412
      %1455 = vmatprep.subr.mxu0 0.0
      %1456 = vmatpush1.msra.mxu0 %v1411
      %1457 = vmatprep.subr.mxu0 0.0
      %1458 = vmatpush1.msra.mxu0 %v1410
      %1459 = vmatprep.subr.mxu0 0.0
      %1460 = vmatpush1.msra.mxu0 %v1409
      %1461 = vmatprep.subr.mxu0 0.0
      %1462 = vmatpush1.msra.mxu0 %v1408
      %1463 = vmatprep.subr.mxu0 0.0
      %1464 = vmatpush2.msra.mxu0 0.0
      %1465 = vmatprep.subr.mxu0 0.0
      %1466 = vmatpush2.msra.mxu0 0.0
      %1467 = vmatprep.subr.mxu0 0.0
      %1468 = vmatpush2.msra.mxu0 0.0
      %1469 = vmatprep.subr.mxu0 0.0
      %1470 = vmatpush2.msra.mxu0 0.0
      %1471 = vmatprep.subr.mxu0 0.0
      %1472 = vmatpush2.msra.mxu0 0.0
      %1473 = vmatprep.subr.mxu0 0.0
      %1474 = vmatpush2.msra.mxu0 0.0
      %1475 = vmatprep.subr.mxu0 0.0
      %1476 = vmatpush2.msra.mxu0 0.0
      %1477 = vmatprep.subr.mxu0 0.0
      %1478 = vmatpush2.msra.mxu0 0.0
      %1479 = vmatprep.subr.mxu0 0.0
      %1480 = vmatpush2.msra.mxu0 0.0
      %1481 = vmatprep.subr.mxu0 0.0
      %1482 = vmatpush2.msra.mxu0 0.0
      %1483 = vmatprep.subr.mxu0 0.0
      %1484 = vmatpush2.msra.mxu0 0.0
      %1485 = vmatprep.subr.mxu0 0.0
      %1486 = vmatpush2.msra.mxu0 0.0
      %1487 = vmatprep.subr.mxu0 0.0
      %1488 = vmatpush2.msra.mxu0 0.0
      %1489 = vmatprep.subr.mxu0 0.0
      %1490 = vmatpush2.msra.mxu0 0.0
      %1491 = vmatprep.subr.mxu0 0.0
      %1492 = vmatpush2.msra.mxu0 0.0
      %1493 = vmatprep.subr.mxu0 0.0
      %1494 = vmatpush2.msra.mxu0 0.0
      %1495 = vmatprep.mubr.f32.mxu0 0.0
      %1496 = vmatmul.mubr.f32.gmra.mxu0 %v1407
      %v1497 = vpop.f32.mrf.mxu0
      %v1498 = vadd.f32 %v1429, %v1497
      %v1499 = vpop.f32.mrf.mxu0
      %1500 = vdwg.mxu0
      %1501 = vst [vmem:[#allocation9] sm:$0xff] %v1498
    $region41: #{tpu_custom_call.1} parent=1 // pred_fallthru
      _
    // Predicated region
    $region42: #{tpu_custom_call.1} parent=1 // pred_check
      _
    $region43: #{tpu_custom_call.1} parent=1 // pred_check_branch
      %1503 = sbr.rel (0) target = $region45
    $region44: #{tpu_custom_call.1} parent=1 // pred_region
      %s1505 = ssub.s32 128, 128
      %1506 = vsyncadd [#allocation6], %s1505
      %s1508 = sshll.u32 [#allocation9], 4
      %s1509 = int_to_ptr.vmem [resolvable:$true] %s1508
      %1511 = dma.vmem_to_hbm [thread:$0]  %s1509, 128, %s6, [#allocation6]
    $region45: #{tpu_custom_call.1} parent=1 // pred_fallthru
      _
    // Predicated region
    $region46: #{tpu_custom_call.1} parent=1 // pred_check
      _
    $region47: #{tpu_custom_call.1} parent=1 // pred_check_branch
      %1513 = sbr.rel (0) target = $region49
    $region48: #{tpu_custom_call.1} parent=1 // pred_region
      %1514 = dma.done [#allocation6], 128
    $region49: #{tpu_custom_call.1} parent=1 // pred_fallthru
      _
    %1515 = vsyncpa [#allocation5], 1
    %1516 = vsyncpa [#allocation8], 1
    %1517 = vsyncpa [#allocation6], 1

</llo_original>
